<compile_context>
chip_gen: v7x
topology: tpu7x:2x2x1
jax: 0.10.0
libtpu: 0.0.40
codegen_flags: <defaults>
</compile_context>

<pallas_src>
import functools
import math

import jax
import jax.numpy as jnp
from jax import lax
from jax.experimental import pallas as pl
from jax.experimental.pallas import tpu as pltpu


def _block_kernel(xq_ref, xfull_ref, ln1_g_ref, ln1_b_ref,
                  wq_ref, wk_ref, wv_ref, wout_ref,
                  ln2_g_ref, ln2_b_ref, w1_ref, b1_ref, w2_ref, b2_ref,
                  o_ref, *, heads, tq, tk):
    H = heads
    TQ, TK = tq, tk
    D = xq_ref.shape[-1]
    Dh = D // H
    eps = 1e-5
    qi = pl.program_id(1)

    def layernorm(z, g, b):
        mu = jnp.mean(z, axis=-1, keepdims=True)
        var = jnp.mean((z - mu) ** 2, axis=-1, keepdims=True)
        return (z - mu) * lax.rsqrt(var + eps) * g + b

    ln1_g = ln1_g_ref[0]
    ln1_b = ln1_b_ref[0]

    # ---- LayerNorm 1 on the query block ----
    xq = xq_ref[0]                                    # (TQ, D) f32
    xn_q = layernorm(xq, ln1_g, ln1_b)

    # Fold the 1/sqrt(Dh) softmax scale into q (cheaper than scaling the
    # (H, TQ, TK) score tensor).
    scale = 1.0 / math.sqrt(Dh)
    q = jnp.dot((xn_q * scale).astype(jnp.bfloat16), wq_ref[...],
                preferred_element_type=jnp.float32)   # (TQ, D) f32 acc
    q = jnp.transpose(q.reshape(TQ, H, Dh), (1, 0, 2)).astype(jnp.bfloat16)

    row_pos = qi * TQ + lax.broadcasted_iota(jnp.int32, (TQ, TK), 0)

    def kv_step(j, carry):
        m, l, acc = carry
        start = pl.multiple_of(j * TK, TK)
        xk = xfull_ref[0, pl.ds(start, TK), :]        # (TK, D) f32
        xn_k = layernorm(xk, ln1_g, ln1_b).astype(jnp.bfloat16)
        k = jnp.dot(xn_k, wk_ref[...], preferred_element_type=jnp.float32)
        v = jnp.dot(xn_k, wv_ref[...], preferred_element_type=jnp.float32)
        k = jnp.transpose(k.reshape(TK, H, Dh), (1, 0, 2)).astype(jnp.bfloat16)
        v = jnp.transpose(v.reshape(TK, H, Dh), (1, 0, 2)).astype(jnp.bfloat16)

        s = jnp.einsum('hqd,hkd->hqk', q, k,
                       preferred_element_type=jnp.float32)   # (H, TQ, TK) f32
        col_pos = start + lax.broadcasted_iota(jnp.int32, (TQ, TK), 1)
        s = jnp.where((col_pos <= row_pos)[None, :, :], s, jnp.float32(-1e30))

        m_new = jnp.maximum(m, jnp.max(s, axis=-1, keepdims=True))
        alpha = jnp.exp(m - m_new)
        p = jnp.exp(s - m_new)
        l_new = alpha * l + jnp.sum(p, axis=-1, keepdims=True)
        acc_new = alpha * acc + jnp.einsum(
            'hqk,hkd->hqd', p.astype(jnp.bfloat16), v,
            preferred_element_type=jnp.float32)
        return m_new, l_new, acc_new

    m0 = jnp.full((H, TQ, 1), -jnp.inf, jnp.float32)
    l0 = jnp.zeros((H, TQ, 1), jnp.float32)
    acc0 = jnp.zeros((H, TQ, Dh), jnp.float32)
    # Causal: kv blocks beyond the query block are fully masked -> skip them.
    _, l, acc = lax.fori_loop(0, qi + 1, kv_step, (m0, l0, acc0))

    # ---- finalize softmax, output projection + residual ----
    attn = acc * pl.reciprocal(l, approx=True)        # (H, TQ, Dh)
    attn = jnp.transpose(attn, (1, 0, 2)).reshape(TQ, D)
    attn_out = jnp.dot(attn.astype(jnp.bfloat16), wout_ref[...],
                       preferred_element_type=jnp.float32)
    x1 = xq + attn_out

    # ---- LayerNorm 2 + FeedForward (row-tiled on the same q block) ----
    xn2 = layernorm(x1, ln2_g_ref[0], ln2_b_ref[0])
    h = jnp.dot(xn2.astype(jnp.bfloat16), w1_ref[...],
                preferred_element_type=jnp.float32) + b1_ref[0]
    h = jnp.maximum(h, 0.0)
    ff = jnp.dot(h.astype(jnp.bfloat16), w2_ref[...],
                 preferred_element_type=jnp.float32) + b2_ref[0]

    o_ref[0] = (x1 + ff).astype(o_ref.dtype)


def block_forward(x, params, *, heads, attention_mask=None, block_q=128):
    """x: (B, S, D) float32; attention_mask must be None (causal-only)."""
    assert attention_mask is None
    B, S, D = x.shape
    assert D % heads == 0
    TQ = min(block_q, S)
    assert S % TQ == 0
    NQ = S // TQ

    # Pre-split QKV and pre-cast all matmul weights to bf16 (MXU-native,
    # halves weight DMA bytes). Biases/LN params stay f32.
    wqkv = params['wqkv']
    wq = wqkv[:, 0 * D:1 * D].astype(jnp.bfloat16)
    wk = wqkv[:, 1 * D:2 * D].astype(jnp.bfloat16)
    wv = wqkv[:, 2 * D:3 * D].astype(jnp.bfloat16)
    wout = params['wout'].astype(jnp.bfloat16)
    w1 = params['w1'].astype(jnp.bfloat16)
    w2 = params['w2'].astype(jnp.bfloat16)

    kernel = functools.partial(_block_kernel, heads=heads, tq=TQ, tk=TQ)

    def resident():
        # Whole array, single copy, resident in VMEM for the entire grid
        # (no per-step re-fetch, no double buffering).
        return pl.BlockSpec(memory_space=pltpu.MemorySpace.VMEM)

    in_specs = [
        pl.BlockSpec((1, TQ, D), lambda b, qi: (b, qi, 0)),  # x, query block
        pl.BlockSpec((1, S, D), lambda b, qi: (b, 0, 0)),    # x, full row (K/V)
        resident(), resident(),                              # ln1 gamma/beta
        resident(), resident(), resident(),                  # wq, wk, wv
        resident(),                                          # wout
        resident(), resident(),                              # ln2 gamma/beta
        resident(), resident(),                              # w1, b1
        resident(), resident(),                              # w2, b2
    ]
    out_spec = pl.BlockSpec((1, TQ, D), lambda b, qi: (b, qi, 0))

    return pl.pallas_call(
        kernel,
        out_shape=jax.ShapeDtypeStruct((B, S, D), x.dtype),
        grid_spec=pltpu.PrefetchScalarGridSpec(
            num_scalar_prefetch=0,
            grid=(B, NQ),
            in_specs=in_specs,
            out_specs=out_spec,
        ),
        compiler_params=pltpu.CompilerParams(
            dimension_semantics=("parallel", "parallel"),
            vmem_limit_bytes=64 * 1024 * 1024,
        ),
    )(x, x, params['ln1_g'], params['ln1_b'], wq, wk, wv, wout,
      params['ln2_g'], params['ln2_b'], w1, params['b1'], w2, params['b2'])


def init_params(key, dmodel):
    ks = jax.random.split(key, 6)
    scale = 0.02
    return {
        'ln1_g': jnp.ones((1, dmodel), jnp.float32),
        'ln1_b': jnp.zeros((1, dmodel), jnp.float32),
        # stored as (in, out) = already-transposed PyTorch weights
        'wqkv': scale * jax.random.normal(ks[0], (dmodel, 3 * dmodel), jnp.float32),
        'wout': scale * jax.random.normal(ks[1], (dmodel, dmodel), jnp.float32),
        'ln2_g': jnp.ones((1, dmodel), jnp.float32),
        'ln2_b': jnp.zeros((1, dmodel), jnp.float32),
        'w1': scale * jax.random.normal(ks[2], (dmodel, 4 * dmodel), jnp.float32),
        'b1': scale * jax.random.normal(ks[3], (1, 4 * dmodel), jnp.float32),
        'w2': scale * jax.random.normal(ks[4], (4 * dmodel, dmodel), jnp.float32),
        'b2': scale * jax.random.normal(ks[5], (1, dmodel), jnp.float32),
    }


def block_ref(x, p, *, heads):
    """Pure-JAX f32 reference for verification."""
    B, S, D = x.shape
    Dh = D // heads
    eps = 1e-5

    def ln(z, g, b):
        mu = jnp.mean(z, -1, keepdims=True)
        var = jnp.mean((z - mu) ** 2, -1, keepdims=True)
        return (z - mu) * lax.rsqrt(var + eps) * g + b

    xn = ln(x, p['ln1_g'][0], p['ln1_b'][0])
    qkv = xn @ p['wqkv']
    q, k, v = jnp.split(qkv, 3, axis=-1)
    q = q.reshape(B, S, heads, Dh).transpose(0, 2, 1, 3)
    k = k.reshape(B, S, heads, Dh).transpose(0, 2, 1, 3)
    v = v.reshape(B, S, heads, Dh).transpose(0, 2, 1, 3)
    s = jnp.einsum('bhsd,bhtd->bhst', q, k) / math.sqrt(Dh)
    mask = jnp.tril(jnp.ones((S, S), bool))
    s = jnp.where(mask, s, -1e30)
    pw = jax.nn.softmax(s, axis=-1)
    o = jnp.einsum('bhst,bhtd->bhsd', pw, v).transpose(0, 2, 1, 3).reshape(B, S, D)
    x1 = x + o @ p['wout']
    h = jnp.maximum(ln(x1, p['ln2_g'][0], p['ln2_b'][0]) @ p['w1'] + p['b1'][0], 0.0)
    return x1 + h @ p['w2'] + p['b2'][0]


if __name__ == "__main__":
    B, S, D, H = 2, 16, 32, 4
    key = jax.random.PRNGKey(0)
    kx, kp = jax.random.split(key)
    x = jax.random.normal(kx, (B, S, D), jnp.float32)
    params = init_params(kp, D)

    # block_q=8 -> 2 query blocks per batch row: exercises the causal
    # kv-block loop and the online-softmax path.
    out = block_forward(x, params, heads=H, attention_mask=None, block_q=8)
    out = jax.block_until_ready(out)

    ref = block_ref(x, params, heads=H)
    assert out.shape == (B, S, D)
    max_err = float(jnp.max(jnp.abs(out - ref)))
    # bf16 MXU operands (f32 accumulation) -> loosened tolerance vs the f32 ref.
    assert jnp.allclose(out, ref, atol=2e-2, rtol=2e-2), f"mismatch vs reference: {max_err}"
    print("KERNEL_OK")
</pallas_src>

<mosaic_0001>
module attributes {stable_mosaic.version = 11 : i64} {
  func.func @_block_kernel(%arg0: i32, %arg1: i32, %arg2: memref<1x8x32xf32, #tpu.memory_space<vmem>>, %arg3: memref<1x16x32xf32, #tpu.memory_space<vmem>>, %arg4: memref<1x32xf32, #tpu.memory_space<vmem>>, %arg5: memref<1x32xf32, #tpu.memory_space<vmem>>, %arg6: memref<32x32xbf16, #tpu.memory_space<vmem>>, %arg7: memref<32x32xbf16, #tpu.memory_space<vmem>>, %arg8: memref<32x32xbf16, #tpu.memory_space<vmem>>, %arg9: memref<32x32xbf16, #tpu.memory_space<vmem>>, %arg10: memref<1x32xf32, #tpu.memory_space<vmem>>, %arg11: memref<1x32xf32, #tpu.memory_space<vmem>>, %arg12: memref<32x128xbf16, #tpu.memory_space<vmem>>, %arg13: memref<1x128xf32, #tpu.memory_space<vmem>>, %arg14: memref<128x32xbf16, #tpu.memory_space<vmem>>, %arg15: memref<1x32xf32, #tpu.memory_space<vmem>>, %arg16: memref<1x8x32xf32, #tpu.memory_space<vmem>>) attributes {dimension_semantics = [#tpu.dimension_semantics<parallel>, #tpu.dimension_semantics<parallel>], iteration_bounds = array<i64: 2, 2>, scalar_prefetch = 0 : i64, scratch_operands = 0 : i64, tpu.core_type = #tpu.core_type<tc>, window_params = [{transform_indices = @transform_0, window_bounds = array<i64: 1, 8, 32>}, {transform_indices = @transform_1, window_bounds = array<i64: 1, 16, 32>}, {pipeline_mode = #tpu.pipeline_mode<synchronous>, transform_indices = @transform_2, window_bounds = array<i64: 1, 32>}, {pipeline_mode = #tpu.pipeline_mode<synchronous>, transform_indices = @transform_3, window_bounds = array<i64: 1, 32>}, {pipeline_mode = #tpu.pipeline_mode<synchronous>, transform_indices = @transform_4, window_bounds = array<i64: 32, 32>}, {pipeline_mode = #tpu.pipeline_mode<synchronous>, transform_indices = @transform_5, window_bounds = array<i64: 32, 32>}, {pipeline_mode = #tpu.pipeline_mode<synchronous>, transform_indices = @transform_6, window_bounds = array<i64: 32, 32>}, {pipeline_mode = #tpu.pipeline_mode<synchronous>, transform_indices = @transform_7, window_bounds = array<i64: 32, 32>}, {pipeline_mode = #tpu.pipeline_mode<synchronous>, transform_indices = @transform_8, window_bounds = array<i64: 1, 32>}, {pipeline_mode = #tpu.pipeline_mode<synchronous>, transform_indices = @transform_9, window_bounds = array<i64: 1, 32>}, {pipeline_mode = #tpu.pipeline_mode<synchronous>, transform_indices = @transform_10, window_bounds = array<i64: 32, 128>}, {pipeline_mode = #tpu.pipeline_mode<synchronous>, transform_indices = @transform_11, window_bounds = array<i64: 1, 128>}, {pipeline_mode = #tpu.pipeline_mode<synchronous>, transform_indices = @transform_12, window_bounds = array<i64: 128, 32>}, {pipeline_mode = #tpu.pipeline_mode<synchronous>, transform_indices = @transform_13, window_bounds = array<i64: 1, 32>}, {transform_indices = @transform_14, window_bounds = array<i64: 1, 8, 32>}]} {
    %c0 = arith.constant 0 : index
    %c0_0 = arith.constant 0 : index
    %0 = vector.load %arg4[%c0, %c0_0] : memref<1x32xf32, #tpu.memory_space<vmem>>, vector<1x32xf32>
    %1 = vector.shape_cast %0 : vector<1x32xf32> to vector<32xf32>
    %c0_1 = arith.constant 0 : index
    %c0_2 = arith.constant 0 : index
    %2 = vector.load %arg5[%c0_1, %c0_2] : memref<1x32xf32, #tpu.memory_space<vmem>>, vector<1x32xf32>
    %3 = vector.shape_cast %2 : vector<1x32xf32> to vector<32xf32>
    %c0_3 = arith.constant 0 : index
    %c0_4 = arith.constant 0 : index
    %c0_5 = arith.constant 0 : index
    %4 = vector.load %arg2[%c0_3, %c0_4, %c0_5] : memref<1x8x32xf32, #tpu.memory_space<vmem>>, vector<1x8x32xf32>
    %5 = vector.shape_cast %4 : vector<1x8x32xf32> to vector<8x32xf32>
    %cst = arith.constant dense<0.000000e+00> : vector<8xf32>
    %6 = vector.multi_reduction <add>, %5, %cst [1] : vector<8x32xf32> to vector<8xf32>
    %7 = vector.shape_cast %6 : vector<8xf32> to vector<8x1xf32>
    %cst_6 = arith.constant 3.200000e+01 : f32
    %8 = vector.broadcast %cst_6 : f32 to vector<8x1xf32>
    %9 = arith.divf %7, %8 : vector<8x1xf32>
    %10 = vector.broadcast %9 : vector<8x1xf32> to vector<8x32xf32>
    %11 = arith.subf %5, %10 : vector<8x32xf32>
    %12 = arith.mulf %11, %11 : vector<8x32xf32>
    %cst_7 = arith.constant dense<0.000000e+00> : vector<8xf32>
    %13 = vector.multi_reduction <add>, %12, %cst_7 [1] : vector<8x32xf32> to vector<8xf32>
    %14 = vector.shape_cast %13 : vector<8xf32> to vector<8x1xf32>
    %cst_8 = arith.constant 3.200000e+01 : f32
    %15 = vector.broadcast %cst_8 : f32 to vector<8x1xf32>
    %16 = arith.divf %14, %15 : vector<8x1xf32>
    %17 = vector.broadcast %9 : vector<8x1xf32> to vector<8x32xf32>
    %18 = arith.subf %5, %17 : vector<8x32xf32>
    %cst_9 = arith.constant 9.99999974E-6 : f32
    %19 = vector.broadcast %cst_9 : f32 to vector<8x1xf32>
    %20 = arith.addf %16, %19 : vector<8x1xf32>
    %21 = math.rsqrt %20 : vector<8x1xf32>
    %22 = vector.broadcast %21 : vector<8x1xf32> to vector<8x32xf32>
    %23 = arith.mulf %18, %22 : vector<8x32xf32>
    %24 = vector.shape_cast %1 : vector<32xf32> to vector<1x32xf32>
    %25 = vector.broadcast %24 : vector<1x32xf32> to vector<8x32xf32>
    %26 = arith.mulf %23, %25 : vector<8x32xf32>
    %27 = vector.shape_cast %3 : vector<32xf32> to vector<1x32xf32>
    %28 = vector.broadcast %27 : vector<1x32xf32> to vector<8x32xf32>
    %29 = arith.addf %26, %28 : vector<8x32xf32>
    %cst_10 = arith.constant 0.353553385 : f32
    %30 = vector.broadcast %cst_10 : f32 to vector<8x32xf32>
    %31 = arith.mulf %29, %30 : vector<8x32xf32>
    %32 = arith.truncf %31 : vector<8x32xf32> to vector<8x32xbf16>
    %c0_11 = arith.constant 0 : index
    %c0_12 = arith.constant 0 : index
    %33 = vector.load %arg6[%c0_11, %c0_12] : memref<32x32xbf16, #tpu.memory_space<vmem>>, vector<32x32xbf16>
    %cst_13 = arith.constant dense<0.000000e+00> : vector<8x32xf32>
    %34 = tpu.matmul %32, %33, %cst_13 {dimension_numbers = #tpu.dot_dimension_numbers<[1], [0], [0], [1], [0, 0, 1, 1], [], []>} : vector<8x32xbf16>, vector<32x32xbf16>, vector<8x32xf32> -> vector<8x32xf32>
    %35 = vector.shape_cast %34 : vector<8x32xf32> to vector<8x4x8xf32>
    %36 = tpu.transpose %35, [1, 0, 2] : vector<8x4x8xf32> -> vector<4x8x8xf32>
    %37 = arith.truncf %36 : vector<4x8x8xf32> to vector<4x8x8xbf16>
    %c8_i32 = arith.constant 8 : i32
    %38 = arith.muli %arg1, %c8_i32 : i32
    %39 = tpu.iota {dimensions = array<i32: 0>} : vector<8x8xi32>
    %40 = vector.broadcast %38 : i32 to vector<8x8xi32>
    %41 = arith.addi %40, %39 : vector<8x8xi32>
    %cst_14 = arith.constant 0xFF800000 : f32
    %42 = vector.broadcast %cst_14 : f32 to vector<4x8x1xf32>
    %cst_15 = arith.constant 0.000000e+00 : f32
    %43 = vector.broadcast %cst_15 : f32 to vector<4x8x1xf32>
    %cst_16 = arith.constant 0.000000e+00 : f32
    %44 = vector.broadcast %cst_16 : f32 to vector<4x8x8xf32>
    %c1_i32 = arith.constant 1 : i32
    %45 = arith.addi %arg1, %c1_i32 : i32
    %c0_i32 = arith.constant 0 : i32
    %46 = arith.subi %45, %c0_i32 : i32
    %47 = arith.addi %c0_i32, %46 : i32
    %c1_i32_17 = arith.constant 1 : i32
    %48:3 = scf.for %arg17 = %c0_i32 to %47 step %c1_i32_17 iter_args(%arg18 = %42, %arg19 = %43, %arg20 = %44) -> (vector<4x8x1xf32>, vector<4x8x1xf32>, vector<4x8x8xf32>)  : i32 {
      %c8_i32_44 = arith.constant 8 : i32
      %108 = arith.muli %arg17, %c8_i32_44 : i32
      %109 = tpu.assume_multiple %108, 8 : i32
      %c0_45 = arith.constant 0 : index
      %110 = arith.index_cast %109 : i32 to index
      %c0_46 = arith.constant 0 : index
      %111 = vector.load %arg3[%c0_45, %110, %c0_46] : memref<1x16x32xf32, #tpu.memory_space<vmem>>, vector<1x8x32xf32>
      %112 = vector.shape_cast %111 : vector<1x8x32xf32> to vector<8x32xf32>
      %cst_47 = arith.constant dense<0.000000e+00> : vector<8xf32>
      %113 = vector.multi_reduction <add>, %112, %cst_47 [1] : vector<8x32xf32> to vector<8xf32>
      %114 = vector.shape_cast %113 : vector<8xf32> to vector<8x1xf32>
      %cst_48 = arith.constant 3.200000e+01 : f32
      %115 = vector.broadcast %cst_48 : f32 to vector<8x1xf32>
      %116 = arith.divf %114, %115 : vector<8x1xf32>
      %117 = vector.broadcast %116 : vector<8x1xf32> to vector<8x32xf32>
      %118 = arith.subf %112, %117 : vector<8x32xf32>
      %119 = arith.mulf %118, %118 : vector<8x32xf32>
      %cst_49 = arith.constant dense<0.000000e+00> : vector<8xf32>
      %120 = vector.multi_reduction <add>, %119, %cst_49 [1] : vector<8x32xf32> to vector<8xf32>
      %121 = vector.shape_cast %120 : vector<8xf32> to vector<8x1xf32>
      %cst_50 = arith.constant 3.200000e+01 : f32
      %122 = vector.broadcast %cst_50 : f32 to vector<8x1xf32>
      %123 = arith.divf %121, %122 : vector<8x1xf32>
      %124 = vector.broadcast %116 : vector<8x1xf32> to vector<8x32xf32>
      %125 = arith.subf %112, %124 : vector<8x32xf32>
      %cst_51 = arith.constant 9.99999974E-6 : f32
      %126 = vector.broadcast %cst_51 : f32 to vector<8x1xf32>
      %127 = arith.addf %123, %126 : vector<8x1xf32>
      %128 = math.rsqrt %127 : vector<8x1xf32>
      %129 = vector.broadcast %128 : vector<8x1xf32> to vector<8x32xf32>
      %130 = arith.mulf %125, %129 : vector<8x32xf32>
      %131 = vector.shape_cast %1 : vector<32xf32> to vector<1x32xf32>
      %132 = vector.broadcast %131 : vector<1x32xf32> to vector<8x32xf32>
      %133 = arith.mulf %130, %132 : vector<8x32xf32>
      %134 = vector.shape_cast %3 : vector<32xf32> to vector<1x32xf32>
      %135 = vector.broadcast %134 : vector<1x32xf32> to vector<8x32xf32>
      %136 = arith.addf %133, %135 : vector<8x32xf32>
      %137 = arith.truncf %136 : vector<8x32xf32> to vector<8x32xbf16>
      %c0_52 = arith.constant 0 : index
      %c0_53 = arith.constant 0 : index
      %138 = vector.load %arg7[%c0_52, %c0_53] : memref<32x32xbf16, #tpu.memory_space<vmem>>, vector<32x32xbf16>
      %cst_54 = arith.constant dense<0.000000e+00> : vector<8x32xf32>
      %139 = tpu.matmul %137, %138, %cst_54 {dimension_numbers = #tpu.dot_dimension_numbers<[1], [0], [0], [1], [0, 0, 1, 1], [], []>} : vector<8x32xbf16>, vector<32x32xbf16>, vector<8x32xf32> -> vector<8x32xf32>
      %c0_55 = arith.constant 0 : index
      %c0_56 = arith.constant 0 : index
      %140 = vector.load %arg8[%c0_55, %c0_56] : memref<32x32xbf16, #tpu.memory_space<vmem>>, vector<32x32xbf16>
      %cst_57 = arith.constant dense<0.000000e+00> : vector<8x32xf32>
      %141 = tpu.matmul %137, %140, %cst_57 {dimension_numbers = #tpu.dot_dimension_numbers<[1], [0], [0], [1], [0, 0, 1, 1], [], []>} : vector<8x32xbf16>, vector<32x32xbf16>, vector<8x32xf32> -> vector<8x32xf32>
      %142 = vector.shape_cast %139 : vector<8x32xf32> to vector<8x4x8xf32>
      %143 = tpu.transpose %142, [1, 0, 2] : vector<8x4x8xf32> -> vector<4x8x8xf32>
      %144 = arith.truncf %143 : vector<4x8x8xf32> to vector<4x8x8xbf16>
      %145 = vector.shape_cast %141 : vector<8x32xf32> to vector<8x4x8xf32>
      %146 = tpu.transpose %145, [1, 0, 2] : vector<8x4x8xf32> -> vector<4x8x8xf32>
      %147 = arith.truncf %146 : vector<4x8x8xf32> to vector<4x8x8xbf16>
      "tpu.trace_start"() <{level = 10 : i32, message = "hqd,hkd->hqk"}> : () -> ()
      %cst_58 = arith.constant dense<0.000000e+00> : vector<4x8x8xf32>
      %148 = tpu.matmul %37, %144, %cst_58 {dimension_numbers = #tpu.dot_dimension_numbers<[2], [2], [1], [1], [0, 0, 0, 1, 1, 1], [0], [0]>} : vector<4x8x8xbf16>, vector<4x8x8xbf16>, vector<4x8x8xf32> -> vector<4x8x8xf32>
      "tpu.trace_stop"() : () -> ()
      %149 = tpu.iota {dimensions = array<i32: 1>} : vector<8x8xi32>
      %150 = vector.broadcast %109 : i32 to vector<8x8xi32>
      %151 = arith.addi %150, %149 : vector<8x8xi32>
      %152 = arith.cmpi sle, %151, %41 : vector<8x8xi32>
      %153 = vector.shape_cast %152 : vector<8x8xi1> to vector<1x8x8xi1>
      %cst_59 = arith.constant -1.000000e+30 : f32
      %154 = vector.shape_cast %153 : vector<1x8x8xi1> to vector<1x8x8xi1>
      %155 = vector.broadcast %154 : vector<1x8x8xi1> to vector<4x8x8xi1>
      %156 = vector.broadcast %cst_59 : f32 to vector<4x8x8xf32>
      %157 = arith.select %155, %148, %156 : vector<4x8x8xi1>, vector<4x8x8xf32>
      %cst_60 = arith.constant dense<0xFF800000> : vector<4x8xf32>
      %158 = vector.multi_reduction <maximumf>, %157, %cst_60 [2] : vector<4x8x8xf32> to vector<4x8xf32>
      %159 = vector.shape_cast %158 : vector<4x8xf32> to vector<4x8x1xf32>
      %160 = arith.maximumf %arg18, %159 : vector<4x8x1xf32>
      %161 = arith.subf %arg18, %160 : vector<4x8x1xf32>
      %162 = math.exp %161 : vector<4x8x1xf32>
      %163 = vector.broadcast %160 : vector<4x8x1xf32> to vector<4x8x8xf32>
      %164 = arith.subf %157, %163 : vector<4x8x8xf32>
      %165 = math.exp %164 : vector<4x8x8xf32>
      %166 = arith.mulf %162, %arg19 : vector<4x8x1xf32>
      %cst_61 = arith.constant dense<0.000000e+00> : vector<4x8xf32>
      %167 = vector.multi_reduction <add>, %165, %cst_61 [2] : vector<4x8x8xf32> to vector<4x8xf32>
      %168 = vector.shape_cast %167 : vector<4x8xf32> to vector<4x8x1xf32>
      %169 = arith.addf %166, %168 : vector<4x8x1xf32>
      %170 = vector.broadcast %162 : vector<4x8x1xf32> to vector<4x8x8xf32>
      %171 = arith.mulf %170, %arg20 : vector<4x8x8xf32>
      %172 = arith.truncf %165 : vector<4x8x8xf32> to vector<4x8x8xbf16>
      "tpu.trace_start"() <{level = 10 : i32, message = "hqk,hkd->hqd"}> : () -> ()
      %cst_62 = arith.constant dense<0.000000e+00> : vector<4x8x8xf32>
      %173 = tpu.matmul %172, %147, %cst_62 {dimension_numbers = #tpu.dot_dimension_numbers<[2], [1], [1], [2], [0, 0, 0, 1, 1, 2], [0], [0]>} : vector<4x8x8xbf16>, vector<4x8x8xbf16>, vector<4x8x8xf32> -> vector<4x8x8xf32>
      "tpu.trace_stop"() : () -> ()
      %174 = arith.addf %171, %173 : vector<4x8x8xf32>
      scf.yield %160, %169, %174 : vector<4x8x1xf32>, vector<4x8x1xf32>, vector<4x8x8xf32>
    }
    %49 = tpu.reciprocal %48#1 {approx = true} : vector<4x8x1xf32> -> vector<4x8x1xf32>
    %50 = vector.broadcast %49 : vector<4x8x1xf32> to vector<4x8x8xf32>
    %51 = arith.mulf %48#2, %50 : vector<4x8x8xf32>
    %52 = tpu.transpose %51, [1, 0, 2] : vector<4x8x8xf32> -> vector<8x4x8xf32>
    %53 = vector.shape_cast %52 : vector<8x4x8xf32> to vector<8x32xf32>
    %54 = arith.truncf %53 : vector<8x32xf32> to vector<8x32xbf16>
    %c0_18 = arith.constant 0 : index
    %c0_19 = arith.constant 0 : index
    %55 = vector.load %arg9[%c0_18, %c0_19] : memref<32x32xbf16, #tpu.memory_space<vmem>>, vector<32x32xbf16>
    %cst_20 = arith.constant dense<0.000000e+00> : vector<8x32xf32>
    %56 = tpu.matmul %54, %55, %cst_20 {dimension_numbers = #tpu.dot_dimension_numbers<[1], [0], [0], [1], [0, 0, 1, 1], [], []>} : vector<8x32xbf16>, vector<32x32xbf16>, vector<8x32xf32> -> vector<8x32xf32>
    %57 = arith.addf %5, %56 : vector<8x32xf32>
    %c0_21 = arith.constant 0 : index
    %c0_22 = arith.constant 0 : index
    %58 = vector.load %arg10[%c0_21, %c0_22] : memref<1x32xf32, #tpu.memory_space<vmem>>, vector<1x32xf32>
    %59 = vector.shape_cast %58 : vector<1x32xf32> to vector<32xf32>
    %c0_23 = arith.constant 0 : index
    %c0_24 = arith.constant 0 : index
    %60 = vector.load %arg11[%c0_23, %c0_24] : memref<1x32xf32, #tpu.memory_space<vmem>>, vector<1x32xf32>
    %61 = vector.shape_cast %60 : vector<1x32xf32> to vector<32xf32>
    %cst_25 = arith.constant dense<0.000000e+00> : vector<8xf32>
    %62 = vector.multi_reduction <add>, %57, %cst_25 [1] : vector<8x32xf32> to vector<8xf32>
    %63 = vector.shape_cast %62 : vector<8xf32> to vector<8x1xf32>
    %cst_26 = arith.constant 3.200000e+01 : f32
    %64 = vector.broadcast %cst_26 : f32 to vector<8x1xf32>
    %65 = arith.divf %63, %64 : vector<8x1xf32>
    %66 = vector.broadcast %65 : vector<8x1xf32> to vector<8x32xf32>
    %67 = arith.subf %57, %66 : vector<8x32xf32>
    %68 = arith.mulf %67, %67 : vector<8x32xf32>
    %cst_27 = arith.constant dense<0.000000e+00> : vector<8xf32>
    %69 = vector.multi_reduction <add>, %68, %cst_27 [1] : vector<8x32xf32> to vector<8xf32>
    %70 = vector.shape_cast %69 : vector<8xf32> to vector<8x1xf32>
    %cst_28 = arith.constant 3.200000e+01 : f32
    %71 = vector.broadcast %cst_28 : f32 to vector<8x1xf32>
    %72 = arith.divf %70, %71 : vector<8x1xf32>
    %73 = vector.broadcast %65 : vector<8x1xf32> to vector<8x32xf32>
    %74 = arith.subf %57, %73 : vector<8x32xf32>
    %cst_29 = arith.constant 9.99999974E-6 : f32
    %75 = vector.broadcast %cst_29 : f32 to vector<8x1xf32>
    %76 = arith.addf %72, %75 : vector<8x1xf32>
    %77 = math.rsqrt %76 : vector<8x1xf32>
    %78 = vector.broadcast %77 : vector<8x1xf32> to vector<8x32xf32>
    %79 = arith.mulf %74, %78 : vector<8x32xf32>
    %80 = vector.shape_cast %59 : vector<32xf32> to vector<1x32xf32>
    %81 = vector.broadcast %80 : vector<1x32xf32> to vector<8x32xf32>
    %82 = arith.mulf %79, %81 : vector<8x32xf32>
    %83 = vector.shape_cast %61 : vector<32xf32> to vector<1x32xf32>
    %84 = vector.broadcast %83 : vector<1x32xf32> to vector<8x32xf32>
    %85 = arith.addf %82, %84 : vector<8x32xf32>
    %86 = arith.truncf %85 : vector<8x32xf32> to vector<8x32xbf16>
    %c0_30 = arith.constant 0 : index
    %c0_31 = arith.constant 0 : index
    %87 = vector.load %arg12[%c0_30, %c0_31] : memref<32x128xbf16, #tpu.memory_space<vmem>>, vector<32x128xbf16>
    %cst_32 = arith.constant dense<0.000000e+00> : vector<8x128xf32>
    %88 = tpu.matmul %86, %87, %cst_32 {dimension_numbers = #tpu.dot_dimension_numbers<[1], [0], [0], [1], [0, 0, 1, 1], [], []>} : vector<8x32xbf16>, vector<32x128xbf16>, vector<8x128xf32> -> vector<8x128xf32>
    %c0_33 = arith.constant 0 : index
    %c0_34 = arith.constant 0 : index
    %89 = vector.load %arg13[%c0_33, %c0_34] : memref<1x128xf32, #tpu.memory_space<vmem>>, vector<1x128xf32>
    %90 = vector.shape_cast %89 : vector<1x128xf32> to vector<128xf32>
    %91 = vector.shape_cast %90 : vector<128xf32> to vector<1x128xf32>
    %92 = vector.broadcast %91 : vector<1x128xf32> to vector<8x128xf32>
    %93 = arith.addf %88, %92 : vector<8x128xf32>
    %cst_35 = arith.constant 0.000000e+00 : f32
    %94 = vector.broadcast %cst_35 : f32 to vector<8x128xf32>
    %95 = arith.maximumf %93, %94 : vector<8x128xf32>
    %96 = arith.truncf %95 : vector<8x128xf32> to vector<8x128xbf16>
    %c0_36 = arith.constant 0 : index
    %c0_37 = arith.constant 0 : index
    %97 = vector.load %arg14[%c0_36, %c0_37] : memref<128x32xbf16, #tpu.memory_space<vmem>>, vector<128x32xbf16>
    %cst_38 = arith.constant dense<0.000000e+00> : vector<8x32xf32>
    %98 = tpu.matmul %96, %97, %cst_38 {dimension_numbers = #tpu.dot_dimension_numbers<[1], [0], [0], [1], [0, 0, 1, 1], [], []>} : vector<8x128xbf16>, vector<128x32xbf16>, vector<8x32xf32> -> vector<8x32xf32>
    %c0_39 = arith.constant 0 : index
    %c0_40 = arith.constant 0 : index
    %99 = vector.load %arg15[%c0_39, %c0_40] : memref<1x32xf32, #tpu.memory_space<vmem>>, vector<1x32xf32>
    %100 = vector.shape_cast %99 : vector<1x32xf32> to vector<32xf32>
    %101 = vector.shape_cast %100 : vector<32xf32> to vector<1x32xf32>
    %102 = vector.broadcast %101 : vector<1x32xf32> to vector<8x32xf32>
    %103 = arith.addf %98, %102 : vector<8x32xf32>
    %104 = arith.addf %57, %103 : vector<8x32xf32>
    %c0_41 = arith.constant 0 : index
    %c0_42 = arith.constant 0 : index
    %c0_43 = arith.constant 0 : index
    %105 = vector.load %arg16[%c0_41, %c0_42, %c0_43] : memref<1x8x32xf32, #tpu.memory_space<vmem>>, vector<1x8x32xf32>
    %106 = vector.shape_cast %105 : vector<1x8x32xf32> to vector<8x32xf32>
    %107 = vector.shape_cast %104 : vector<8x32xf32> to vector<1x8x32xf32>
    tpu.vector_store %arg16[%c0_41, %c0_42, %c0_43], %107 {strides = array<i32>} : memref<1x8x32xf32, #tpu.memory_space<vmem>>, vector<1x8x32xf32>,
    return
  }
  func.func @transform_0(%arg0: i32, %arg1: i32) -> (i32, i32, i32) {
    %c0_i32 = arith.constant 0 : i32
    %c0_i32_0 = arith.constant 0 : i32
    return %arg0, %arg1, %c0_i32 : i32, i32, i32
  }
  func.func @transform_1(%arg0: i32, %arg1: i32) -> (i32, i32, i32) {
    %c0_i32 = arith.constant 0 : i32
    %c0_i32_0 = arith.constant 0 : i32
    %c0_i32_1 = arith.constant 0 : i32
    return %arg0, %c0_i32, %c0_i32_0 : i32, i32, i32
  }
  func.func @transform_2(%arg0: i32, %arg1: i32) -> (i32, i32) {
    %c0_i32 = arith.constant 0 : i32
    %c0_i32_0 = arith.constant 0 : i32
    %c0_i32_1 = arith.constant 0 : i32
    return %c0_i32, %c0_i32_0 : i32, i32
  }
  func.func @transform_3(%arg0: i32, %arg1: i32) -> (i32, i32) {
    %c0_i32 = arith.constant 0 : i32
    %c0_i32_0 = arith.constant 0 : i32
    %c0_i32_1 = arith.constant 0 : i32
    return %c0_i32, %c0_i32_0 : i32, i32
  }
  func.func @transform_4(%arg0: i32, %arg1: i32) -> (i32, i32) {
    %c0_i32 = arith.constant 0 : i32
    %c0_i32_0 = arith.constant 0 : i32
    %c0_i32_1 = arith.constant 0 : i32
    return %c0_i32, %c0_i32_0 : i32, i32
  }
  func.func @transform_5(%arg0: i32, %arg1: i32) -> (i32, i32) {
    %c0_i32 = arith.constant 0 : i32
    %c0_i32_0 = arith.constant 0 : i32
    %c0_i32_1 = arith.constant 0 : i32
    return %c0_i32, %c0_i32_0 : i32, i32
  }
  func.func @transform_6(%arg0: i32, %arg1: i32) -> (i32, i32) {
    %c0_i32 = arith.constant 0 : i32
    %c0_i32_0 = arith.constant 0 : i32
    %c0_i32_1 = arith.constant 0 : i32
    return %c0_i32, %c0_i32_0 : i32, i32
  }
  func.func @transform_7(%arg0: i32, %arg1: i32) -> (i32, i32) {
    %c0_i32 = arith.constant 0 : i32
    %c0_i32_0 = arith.constant 0 : i32
    %c0_i32_1 = arith.constant 0 : i32
    return %c0_i32, %c0_i32_0 : i32, i32
  }
  func.func @transform_8(%arg0: i32, %arg1: i32) -> (i32, i32) {
    %c0_i32 = arith.constant 0 : i32
    %c0_i32_0 = arith.constant 0 : i32
    %c0_i32_1 = arith.constant 0 : i32
    return %c0_i32, %c0_i32_0 : i32, i32
  }
  func.func @transform_9(%arg0: i32, %arg1: i32) -> (i32, i32) {
    %c0_i32 = arith.constant 0 : i32
    %c0_i32_0 = arith.constant 0 : i32
    %c0_i32_1 = arith.constant 0 : i32
    return %c0_i32, %c0_i32_0 : i32, i32
  }
  func.func @transform_10(%arg0: i32, %arg1: i32) -> (i32, i32) {
    %c0_i32 = arith.constant 0 : i32
    %c0_i32_0 = arith.constant 0 : i32
    %c0_i32_1 = arith.constant 0 : i32
    return %c0_i32, %c0_i32_0 : i32, i32
  }
  func.func @transform_11(%arg0: i32, %arg1: i32) -> (i32, i32) {
    %c0_i32 = arith.constant 0 : i32
    %c0_i32_0 = arith.constant 0 : i32
    %c0_i32_1 = arith.constant 0 : i32
    return %c0_i32, %c0_i32_0 : i32, i32
  }
  func.func @transform_12(%arg0: i32, %arg1: i32) -> (i32, i32) {
    %c0_i32 = arith.constant 0 : i32
    %c0_i32_0 = arith.constant 0 : i32
    %c0_i32_1 = arith.constant 0 : i32
    return %c0_i32, %c0_i32_0 : i32, i32
  }
  func.func @transform_13(%arg0: i32, %arg1: i32) -> (i32, i32) {
    %c0_i32 = arith.constant 0 : i32
    %c0_i32_0 = arith.constant 0 : i32
    %c0_i32_1 = arith.constant 0 : i32
    return %c0_i32, %c0_i32_0 : i32, i32
  }
  func.func @transform_14(%arg0: i32, %arg1: i32) -> (i32, i32, i32) {
    %c0_i32 = arith.constant 0 : i32
    %c0_i32_0 = arith.constant 0 : i32
    return %arg0, %arg1, %c0_i32 : i32, i32, i32
  }
}

</mosaic_0001>

<llo_original>
// kernel: tpu_custom_call.1
$region0: #{tpu_custom_call.1}
  #allocation0 [shape = 'u32[]', space=smem, size = 0x4, offset = 0x4, fixed_abs, tag = 'smem constant byte address 0x4 - core index']
  #allocation1 [shape = 'u32[144,128]{1,0:T(1,128)}', space=vmem, size = 0x12000, scoped, tag = 'internal scratch']
  %s0 = inlined_call_operand.hbm [shape: f32[2,16,32], index: 0, kind: input, shape index: {}]
  %s1 = inlined_call_operand.hbm [shape: f32[2,16,32], index: 1, kind: input, shape index: {}]
  %s2 = inlined_call_operand.hbm [shape: f32[1,32], index: 2, kind: input, shape index: {}]
  %s3 = inlined_call_operand.hbm [shape: f32[1,32], index: 3, kind: input, shape index: {}]
  %s4 = inlined_call_operand.hbm [shape: bf16[32,32], index: 4, kind: input, shape index: {}]
  %s5 = inlined_call_operand.hbm [shape: bf16[32,32], index: 5, kind: input, shape index: {}]
  %s6 = inlined_call_operand.hbm [shape: bf16[32,32], index: 6, kind: input, shape index: {}]
  %s7 = inlined_call_operand.hbm [shape: bf16[32,32], index: 7, kind: input, shape index: {}]
  %s8 = inlined_call_operand.hbm [shape: f32[1,32], index: 8, kind: input, shape index: {}]
  %s9 = inlined_call_operand.hbm [shape: f32[1,32], index: 9, kind: input, shape index: {}]
  %s10 = inlined_call_operand.hbm [shape: bf16[32,128], index: 10, kind: input, shape index: {}]
  %s11 = inlined_call_operand.hbm [shape: f32[1,128], index: 11, kind: input, shape index: {}]
  %s12 = inlined_call_operand.hbm [shape: bf16[128,32], index: 12, kind: input, shape index: {}]
  %s13 = inlined_call_operand.hbm [shape: f32[1,32], index: 13, kind: input, shape index: {}]
  %s14 = inlined_call_operand.hbm [shape: f32[2,16,32], index: 14, kind: output, shape index: {}]
  %s15 = sld [smem:[#allocation0]]
  $region152: #{tpu_custom_call.1} parent=0
    _
  %s17 = ssub.s32 1, %s15
  %s18 = scalar_select 0, %s17, %s15
  $region1: #{tpu_custom_call.1} parent=0
    #allocation2 [shape = 'u8[8192]{0}', space=vmem, size = 0x2000, scoped, tag = 'input window, operand 0']
    #allocation3 [shape = 's32[2]{0}', space=sflag, size = 0x8, scoped, tag = 'scoped memory for tpu_custom_call.1']
    #allocation4 [shape = 's32[2]{0}', space=sflag, size = 0x8, scoped, tag = 'scoped memory for tpu_custom_call.1']
    #allocation5 [shape = 'u8[16384]{0}', space=vmem, size = 0x4000, scoped, tag = 'input window, operand 1']
    #allocation6 [shape = 's32[2]{0}', space=sflag, size = 0x8, scoped, tag = 'scoped memory for tpu_custom_call.1']
    #allocation7 [shape = 'u8[512]{0}', space=vmem, size = 0x400, scoped, tag = 'input window, operand 2, single buffered']
    #allocation8 [shape = 'u8[512]{0}', space=vmem, size = 0x400, scoped, tag = 'input window, operand 3, single buffered']
    #allocation9 [shape = 's32[1]{0}', space=sflag, size = 0x4, scoped, tag = 'scoped memory for tpu_custom_call.1']
    #allocation10 [shape = 'u8[8192]{0}', space=vmem, size = 0x2000, scoped, tag = 'input window, operand 4, single buffered']
    #allocation11 [shape = 'u8[8192]{0}', space=vmem, size = 0x2000, scoped, tag = 'input window, operand 5, single buffered']
    #allocation12 [shape = 's32[1]{0}', space=sflag, size = 0x4, scoped, tag = 'scoped memory for tpu_custom_call.1']
    #allocation13 [shape = 'u8[8192]{0}', space=vmem, size = 0x2000, scoped, tag = 'input window, operand 6, single buffered']
    #allocation14 [shape = 'u8[8192]{0}', space=vmem, size = 0x2000, scoped, tag = 'input window, operand 7, single buffered']
    #allocation15 [shape = 's32[1]{0}', space=sflag, size = 0x4, scoped, tag = 'scoped memory for tpu_custom_call.1']
    #allocation16 [shape = 'u8[512]{0}', space=vmem, size = 0x400, scoped, tag = 'input window, operand 8, single buffered']
    #allocation17 [shape = 'u8[512]{0}', space=vmem, size = 0x400, scoped, tag = 'input window, operand 9, single buffered']
    #allocation18 [shape = 's32[1]{0}', space=sflag, size = 0x4, scoped, tag = 'scoped memory for tpu_custom_call.1']
    #allocation19 [shape = 'u8[8192]{0}', space=vmem, size = 0x2000, scoped, tag = 'input window, operand 10, single buffered']
    #allocation20 [shape = 'u8[512]{0}', space=vmem, size = 0x400, scoped, tag = 'input window, operand 11, single buffered']
    #allocation21 [shape = 's32[1]{0}', space=sflag, size = 0x4, scoped, tag = 'scoped memory for tpu_custom_call.1']
    #allocation22 [shape = 'u8[32768]{0}', space=vmem, size = 0x8000, scoped, tag = 'input window, operand 12, single buffered']
    #allocation23 [shape = 'u8[512]{0}', space=vmem, size = 0x400, scoped, tag = 'input window, operand 13, single buffered']
    #allocation24 [shape = 's32[1]{0}', space=sflag, size = 0x4, scoped, tag = 'scoped memory for tpu_custom_call.1']
    #allocation25 [shape = 'u8[8192]{0}', space=vmem, size = 0x2000, scoped, tag = 'output window, operand 0']
    %19 = vsyncpa [#allocation3], 0
    %s20 = scalar_lea.sflag [#allocation3], 1
    %21 = vsyncpa %s20, 0
    %22 = vsyncpa [#allocation6], 0
    %s23 = scalar_lea.sflag [#allocation6], 1
    %24 = vsyncpa %s23, 0
    %25 = vsyncpa [#allocation9], 0
    %26 = vsyncpa [#allocation12], 0
    %27 = vsyncpa [#allocation15], 0
    %28 = vsyncpa [#allocation18], 0
    %29 = vsyncpa [#allocation21], 0
    %30 = vsyncpa [#allocation24], 0
    %31 = vsyncpa [#allocation4], 0
    %s32 = scalar_lea.sflag [#allocation4], 1
    %33 = vsyncpa %s32, 0
    loop: start=0, step=1, limit=6
    $region2: #{tpu_custom_call.1} parent=1 // loop_pre_header
      _
    $region3: #{tpu_custom_call.1} parent=1 // loop_header
      %s35 = sphi 0, %s39
      %p36 = scmp.ge.s32.totalorder %s35, 6
      %s42 = sphi 0, %s54
      %s43 = sphi 0, %s50
      %s44 = sphi 0, %s42
      %s45 = sphi 0, %s43
      %s46 = sphi 0, %s44
      %s47 = sphi 0, %s45
      %s59 = sphi 0, %s61
      %s62 = sphi 0, %s59
      %s63 = sphi 0, %s62
      %s79 = sphi 0, %s63
      %s85 = sphi 0, %s87
      %s88 = sphi 0, %s85
      %s89 = sphi 0, %s88
      %s105 = sphi 0, %s89
      %s109 = sphi 0, %s109
      %s111 = sphi 0, %s109
      %s112 = sphi 0, %s111
      %s126 = sphi 0, %s112
      %s130 = sphi 0, %s130
      %s132 = sphi 0, %s130
      %s133 = sphi 0, %s132
      %s147 = sphi 0, %s133
      %s151 = sphi 0, %s151
      %s153 = sphi 0, %s151
      %s154 = sphi 0, %s153
      %s168 = sphi 0, %s154
      %s172 = sphi 0, %s172
      %s174 = sphi 0, %s172
      %s175 = sphi 0, %s174
      %s189 = sphi 0, %s175
      %s193 = sphi 0, %s193
      %s195 = sphi 0, %s193
      %s196 = sphi 0, %s195
      %s210 = sphi 0, %s196
      %s214 = sphi 0, %s214
      %s216 = sphi 0, %s214
      %s217 = sphi 0, %s216
      %s231 = sphi 0, %s217
      %s235 = sphi 0, %s235
      %s237 = sphi 0, %s235
      %s238 = sphi 0, %s237
      %s252 = sphi 0, %s238
      %s256 = sphi 0, %s256
      %s258 = sphi 0, %s256
      %s259 = sphi 0, %s258
      %s273 = sphi 0, %s259
      %s277 = sphi 0, %s277
      %s279 = sphi 0, %s277
      %s280 = sphi 0, %s279
      %s294 = sphi 0, %s280
      %s298 = sphi 0, %s298
      %s300 = sphi 0, %s298
      %s301 = sphi 0, %s300
      %s315 = sphi 0, %s301
      %s319 = sphi 0, %s319
      %s321 = sphi 0, %s319
      %s322 = sphi 0, %s321
      %s336 = sphi 0, %s322
      %s340 = sphi 0, %s340
      %s342 = sphi 0, %s340
      %s343 = sphi 0, %s342
      %s357 = sphi 0, %s343
      %s365 = sphi 0, %s367
      %s368 = sphi 0, %s365
      %s369 = sphi 0, %s368
      %s385 = sphi 0, %s369
    $region4: #{tpu_custom_call.1} parent=1 // loop_header_branch
      %38 = sbr.rel (%p36) target = $region8
    $region5: #{tpu_custom_call.1} parent=1 // loop_body
      %s40 = ssub.s32 %s35, 1
      %s41 = ssub.s32 %s35, 2
      %s48 = sadd.s32 1, %s43
      %p49 = scmp.ge.s32.totalorder %s48, 2
      %s50 = scalar_select %p49, 0, %s48
      %s51 = sadd.s32 1, %s42
      %s52 = scalar_select %p49, %s51, %s42
      %p53 = scmp.ge.s32.totalorder %s52, 2
      %s54 = scalar_select %p53, 0, %s52
      %s55 = ssub.s32 %s42, %s54
      %s56 = ssub.s32 %s43, %s50
      %s57 = sor.u32 %s55, %s56
      %p58 = scmp.eq.s32.totalorder %s57, 0
      %s60 = sadd.s32 %s59, 1
      %s61 = scalar_select %p58, %s59, %s60
      %p64 = pneg %p58
      %p65 = scmp.eq.s32.totalorder %s35, 3
      %p66 = por %p64, %p65
      %p67 = scmp.ne.s32.totalorder %s59, %s62
      %p68 = scmp.eq.s32.totalorder %s35, 0
      %p69 = por %p67, %p68
      %p70 = scmp.ne.s32.totalorder %s59, %s62
      %p71 = scmp.eq.s32.totalorder %s40, 3
      %p72 = por %p70, %p71
      %p73 = scmp.ne.s32.totalorder %s62, %s63
      %p74 = scmp.eq.s32.totalorder %s40, 0
      %p75 = por %p73, %p74
      %p76 = scmp.ne.s32.totalorder %s62, %s63
      %p77 = scmp.eq.s32.totalorder %s41, 3
      %p78 = por %p76, %p77
      %p80 = scmp.ne.s32.totalorder %s63, %s79
      %p81 = scmp.eq.s32.totalorder %s41, 0
      %p82 = por %p80, %p81
      %s83 = ssub.s32 %s42, %s54
      %p84 = scmp.eq.s32.totalorder %s83, 0
      %s86 = sadd.s32 %s85, 1
      %s87 = scalar_select %p84, %s85, %s86
      %p90 = pneg %p84
      %p91 = scmp.eq.s32.totalorder %s35, 3
      %p92 = por %p90, %p91
      %p93 = scmp.ne.s32.totalorder %s85, %s88
      %p94 = scmp.eq.s32.totalorder %s35, 0
      %p95 = por %p93, %p94
      %p96 = scmp.ne.s32.totalorder %s85, %s88
      %p97 = scmp.eq.s32.totalorder %s40, 3
      %p98 = por %p96, %p97
      %p99 = scmp.ne.s32.totalorder %s88, %s89
      %p100 = scmp.eq.s32.totalorder %s40, 0
      %p101 = por %p99, %p100
      %p102 = scmp.ne.s32.totalorder %s88, %s89
      %p103 = scmp.eq.s32.totalorder %s41, 3
      %p104 = por %p102, %p103
      %p106 = scmp.ne.s32.totalorder %s89, %s105
      %p107 = scmp.eq.s32.totalorder %s41, 0
      %p108 = por %p106, %p107
      %s110 = sadd.s32 %s109, 1
      %p113 = scmp.eq.s32.totalorder %s35, 3
      %p114 = scmp.ne.s32.totalorder %s109, %s111
      %p115 = scmp.eq.s32.totalorder %s35, 0
      %p116 = por %p114, %p115
      %p117 = scmp.ne.s32.totalorder %s109, %s111
      %p118 = scmp.eq.s32.totalorder %s40, 3
      %p119 = por %p117, %p118
      %p120 = scmp.ne.s32.totalorder %s111, %s112
      %p121 = scmp.eq.s32.totalorder %s40, 0
      %p122 = por %p120, %p121
      %p123 = scmp.ne.s32.totalorder %s111, %s112
      %p124 = scmp.eq.s32.totalorder %s41, 3
      %p125 = por %p123, %p124
      %p127 = scmp.ne.s32.totalorder %s112, %s126
      %p128 = scmp.eq.s32.totalorder %s41, 0
      %p129 = por %p127, %p128
      %s131 = sadd.s32 %s130, 1
      %p134 = scmp.eq.s32.totalorder %s35, 3
      %p135 = scmp.ne.s32.totalorder %s130, %s132
      %p136 = scmp.eq.s32.totalorder %s35, 0
      %p137 = por %p135, %p136
      %p138 = scmp.ne.s32.totalorder %s130, %s132
      %p139 = scmp.eq.s32.totalorder %s40, 3
      %p140 = por %p138, %p139
      %p141 = scmp.ne.s32.totalorder %s132, %s133
      %p142 = scmp.eq.s32.totalorder %s40, 0
      %p143 = por %p141, %p142
      %p144 = scmp.ne.s32.totalorder %s132, %s133
      %p145 = scmp.eq.s32.totalorder %s41, 3
      %p146 = por %p144, %p145
      %p148 = scmp.ne.s32.totalorder %s133, %s147
      %p149 = scmp.eq.s32.totalorder %s41, 0
      %p150 = por %p148, %p149
      %s152 = sadd.s32 %s151, 1
      %p155 = scmp.eq.s32.totalorder %s35, 3
      %p156 = scmp.ne.s32.totalorder %s151, %s153
      %p157 = scmp.eq.s32.totalorder %s35, 0
      %p158 = por %p156, %p157
      %p159 = scmp.ne.s32.totalorder %s151, %s153
      %p160 = scmp.eq.s32.totalorder %s40, 3
      %p161 = por %p159, %p160
      %p162 = scmp.ne.s32.totalorder %s153, %s154
      %p163 = scmp.eq.s32.totalorder %s40, 0
      %p164 = por %p162, %p163
      %p165 = scmp.ne.s32.totalorder %s153, %s154
      %p166 = scmp.eq.s32.totalorder %s41, 3
      %p167 = por %p165, %p166
      %p169 = scmp.ne.s32.totalorder %s154, %s168
      %p170 = scmp.eq.s32.totalorder %s41, 0
      %p171 = por %p169, %p170
      %s173 = sadd.s32 %s172, 1
      %p176 = scmp.eq.s32.totalorder %s35, 3
      %p177 = scmp.ne.s32.totalorder %s172, %s174
      %p178 = scmp.eq.s32.totalorder %s35, 0
      %p179 = por %p177, %p178
      %p180 = scmp.ne.s32.totalorder %s172, %s174
      %p181 = scmp.eq.s32.totalorder %s40, 3
      %p182 = por %p180, %p181
      %p183 = scmp.ne.s32.totalorder %s174, %s175
      %p184 = scmp.eq.s32.totalorder %s40, 0
      %p185 = por %p183, %p184
      %p186 = scmp.ne.s32.totalorder %s174, %s175
      %p187 = scmp.eq.s32.totalorder %s41, 3
      %p188 = por %p186, %p187
      %p190 = scmp.ne.s32.totalorder %s175, %s189
      %p191 = scmp.eq.s32.totalorder %s41, 0
      %p192 = por %p190, %p191
      %s194 = sadd.s32 %s193, 1
      %p197 = scmp.eq.s32.totalorder %s35, 3
      %p198 = scmp.ne.s32.totalorder %s193, %s195
      %p199 = scmp.eq.s32.totalorder %s35, 0
      %p200 = por %p198, %p199
      %p201 = scmp.ne.s32.totalorder %s193, %s195
      %p202 = scmp.eq.s32.totalorder %s40, 3
      %p203 = por %p201, %p202
      %p204 = scmp.ne.s32.totalorder %s195, %s196
      %p205 = scmp.eq.s32.totalorder %s40, 0
      %p206 = por %p204, %p205
      %p207 = scmp.ne.s32.totalorder %s195, %s196
      %p208 = scmp.eq.s32.totalorder %s41, 3
      %p209 = por %p207, %p208
      %p211 = scmp.ne.s32.totalorder %s196, %s210
      %p212 = scmp.eq.s32.totalorder %s41, 0
      %p213 = por %p211, %p212
      %s215 = sadd.s32 %s214, 1
      %p218 = scmp.eq.s32.totalorder %s35, 3
      %p219 = scmp.ne.s32.totalorder %s214, %s216
      %p220 = scmp.eq.s32.totalorder %s35, 0
      %p221 = por %p219, %p220
      %p222 = scmp.ne.s32.totalorder %s214, %s216
      %p223 = scmp.eq.s32.totalorder %s40, 3
      %p224 = por %p222, %p223
      %p225 = scmp.ne.s32.totalorder %s216, %s217
      %p226 = scmp.eq.s32.totalorder %s40, 0
      %p227 = por %p225, %p226
      %p228 = scmp.ne.s32.totalorder %s216, %s217
      %p229 = scmp.eq.s32.totalorder %s41, 3
      %p230 = por %p228, %p229
      %p232 = scmp.ne.s32.totalorder %s217, %s231
      %p233 = scmp.eq.s32.totalorder %s41, 0
      %p234 = por %p232, %p233
      %s236 = sadd.s32 %s235, 1
      %p239 = scmp.eq.s32.totalorder %s35, 3
      %p240 = scmp.ne.s32.totalorder %s235, %s237
      %p241 = scmp.eq.s32.totalorder %s35, 0
      %p242 = por %p240, %p241
      %p243 = scmp.ne.s32.totalorder %s235, %s237
      %p244 = scmp.eq.s32.totalorder %s40, 3
      %p245 = por %p243, %p244
      %p246 = scmp.ne.s32.totalorder %s237, %s238
      %p247 = scmp.eq.s32.totalorder %s40, 0
      %p248 = por %p246, %p247
      %p249 = scmp.ne.s32.totalorder %s237, %s238
      %p250 = scmp.eq.s32.totalorder %s41, 3
      %p251 = por %p249, %p250
      %p253 = scmp.ne.s32.totalorder %s238, %s252
      %p254 = scmp.eq.s32.totalorder %s41, 0
      %p255 = por %p253, %p254
      %s257 = sadd.s32 %s256, 1
      %p260 = scmp.eq.s32.totalorder %s35, 3
      %p261 = scmp.ne.s32.totalorder %s256, %s258
      %p262 = scmp.eq.s32.totalorder %s35, 0
      %p263 = por %p261, %p262
      %p264 = scmp.ne.s32.totalorder %s256, %s258
      %p265 = scmp.eq.s32.totalorder %s40, 3
      %p266 = por %p264, %p265
      %p267 = scmp.ne.s32.totalorder %s258, %s259
      %p268 = scmp.eq.s32.totalorder %s40, 0
      %p269 = por %p267, %p268
      %p270 = scmp.ne.s32.totalorder %s258, %s259
      %p271 = scmp.eq.s32.totalorder %s41, 3
      %p272 = por %p270, %p271
      %p274 = scmp.ne.s32.totalorder %s259, %s273
      %p275 = scmp.eq.s32.totalorder %s41, 0
      %p276 = por %p274, %p275
      %s278 = sadd.s32 %s277, 1
      %p281 = scmp.eq.s32.totalorder %s35, 3
      %p282 = scmp.ne.s32.totalorder %s277, %s279
      %p283 = scmp.eq.s32.totalorder %s35, 0
      %p284 = por %p282, %p283
      %p285 = scmp.ne.s32.totalorder %s277, %s279
      %p286 = scmp.eq.s32.totalorder %s40, 3
      %p287 = por %p285, %p286
      %p288 = scmp.ne.s32.totalorder %s279, %s280
      %p289 = scmp.eq.s32.totalorder %s40, 0
      %p290 = por %p288, %p289
      %p291 = scmp.ne.s32.totalorder %s279, %s280
      %p292 = scmp.eq.s32.totalorder %s41, 3
      %p293 = por %p291, %p292
      %p295 = scmp.ne.s32.totalorder %s280, %s294
      %p296 = scmp.eq.s32.totalorder %s41, 0
      %p297 = por %p295, %p296
      %s299 = sadd.s32 %s298, 1
      %p302 = scmp.eq.s32.totalorder %s35, 3
      %p303 = scmp.ne.s32.totalorder %s298, %s300
      %p304 = scmp.eq.s32.totalorder %s35, 0
      %p305 = por %p303, %p304
      %p306 = scmp.ne.s32.totalorder %s298, %s300
      %p307 = scmp.eq.s32.totalorder %s40, 3
      %p308 = por %p306, %p307
      %p309 = scmp.ne.s32.totalorder %s300, %s301
      %p310 = scmp.eq.s32.totalorder %s40, 0
      %p311 = por %p309, %p310
      %p312 = scmp.ne.s32.totalorder %s300, %s301
      %p313 = scmp.eq.s32.totalorder %s41, 3
      %p314 = por %p312, %p313
      %p316 = scmp.ne.s32.totalorder %s301, %s315
      %p317 = scmp.eq.s32.totalorder %s41, 0
      %p318 = por %p316, %p317
      %s320 = sadd.s32 %s319, 1
      %p323 = scmp.eq.s32.totalorder %s35, 3
      %p324 = scmp.ne.s32.totalorder %s319, %s321
      %p325 = scmp.eq.s32.totalorder %s35, 0
      %p326 = por %p324, %p325
      %p327 = scmp.ne.s32.totalorder %s319, %s321
      %p328 = scmp.eq.s32.totalorder %s40, 3
      %p329 = por %p327, %p328
      %p330 = scmp.ne.s32.totalorder %s321, %s322
      %p331 = scmp.eq.s32.totalorder %s40, 0
      %p332 = por %p330, %p331
      %p333 = scmp.ne.s32.totalorder %s321, %s322
      %p334 = scmp.eq.s32.totalorder %s41, 3
      %p335 = por %p333, %p334
      %p337 = scmp.ne.s32.totalorder %s322, %s336
      %p338 = scmp.eq.s32.totalorder %s41, 0
      %p339 = por %p337, %p338
      %s341 = sadd.s32 %s340, 1
      %p344 = scmp.eq.s32.totalorder %s35, 3
      %p345 = scmp.ne.s32.totalorder %s340, %s342
      %p346 = scmp.eq.s32.totalorder %s35, 0
      %p347 = por %p345, %p346
      %p348 = scmp.ne.s32.totalorder %s340, %s342
      %p349 = scmp.eq.s32.totalorder %s40, 3
      %p350 = por %p348, %p349
      %p351 = scmp.ne.s32.totalorder %s342, %s343
      %p352 = scmp.eq.s32.totalorder %s40, 0
      %p353 = por %p351, %p352
      %p354 = scmp.ne.s32.totalorder %s342, %s343
      %p355 = scmp.eq.s32.totalorder %s41, 3
      %p356 = por %p354, %p355
      %p358 = scmp.ne.s32.totalorder %s343, %s357
      %p359 = scmp.eq.s32.totalorder %s41, 0
      %p360 = por %p358, %p359
      %s361 = ssub.s32 %s42, %s54
      %s362 = ssub.s32 %s43, %s50
      %s363 = sor.u32 %s361, %s362
      %p364 = scmp.eq.s32.totalorder %s363, 0
      %s366 = sadd.s32 %s365, 1
      %s367 = scalar_select %p364, %s365, %s366
      %p370 = pneg %p364
      %p371 = scmp.eq.s32.totalorder %s35, 3
      %p372 = por %p370, %p371
      %p373 = scmp.ne.s32.totalorder %s365, %s368
      %p374 = scmp.eq.s32.totalorder %s35, 0
      %p375 = por %p373, %p374
      %p376 = scmp.ne.s32.totalorder %s365, %s368
      %p377 = scmp.eq.s32.totalorder %s40, 3
      %p378 = por %p376, %p377
      %p379 = scmp.ne.s32.totalorder %s368, %s369
      %p380 = scmp.eq.s32.totalorder %s40, 0
      %p381 = por %p379, %p380
      %p382 = scmp.ne.s32.totalorder %s368, %s369
      %p383 = scmp.eq.s32.totalorder %s41, 3
      %p384 = por %p382, %p383
      %p386 = scmp.ne.s32.totalorder %s369, %s385
      %p387 = scmp.eq.s32.totalorder %s41, 0
      %p388 = por %p386, %p387
      %p389 = scmp.le.s32.totalorder 1, %s35
      %p390 = scmp.lt.s32.totalorder %s35, 5
      %p391 = pnand %p389, %p390
      %p392 = pneg %p391
      // Predicated region
      $region9: #{tpu_custom_call.1} parent=5 // pred_check
        _
      $region10: #{tpu_custom_call.1} parent=5 // pred_check_branch
        %394 = sbr.rel (%p391) target = $region12
      $region11: #{tpu_custom_call.1} parent=5 // pred_region
        %s395 = ssub.s32 %s35, 1
        // Predicated region
        $region13: #{tpu_custom_call.1} parent=11 // pred_check
          %p396 = pneg %p122
        $region14: #{tpu_custom_call.1} parent=11 // pred_check_branch
          %398 = sbr.rel (%p396) target = $region16
        $region15: #{tpu_custom_call.1} parent=11 // pred_region
          %s400 = ssub.s32 16, 16
          %401 = vsyncadd [#allocation6], %s400
          %s403 = sshll.u32 [#allocation7], 4
          %s404 = int_to_ptr.vmem [resolvable:$true] %s403
          %406 = dma.hbm_to_vmem [thread:$0]  %s2, 16, %s404, [#allocation6]
        $region16: #{tpu_custom_call.1} parent=11 // pred_fallthru
          _
        // Predicated region
        $region17: #{tpu_custom_call.1} parent=11 // pred_check
          %p407 = pneg %p143
        $region18: #{tpu_custom_call.1} parent=11 // pred_check_branch
          %409 = sbr.rel (%p407) target = $region20
        $region19: #{tpu_custom_call.1} parent=11 // pred_region
          %s411 = ssub.s32 16, 16
          %412 = vsyncadd [#allocation9], %s411
          %s414 = sshll.u32 [#allocation8], 4
          %s415 = int_to_ptr.vmem [resolvable:$true] %s414
          %417 = dma.hbm_to_vmem [thread:$0]  %s3, 16, %s415, [#allocation9]
        $region20: #{tpu_custom_call.1} parent=11 // pred_fallthru
          _
        // Predicated region
        $region21: #{tpu_custom_call.1} parent=11 // pred_check
          %p418 = pneg %p164
        $region22: #{tpu_custom_call.1} parent=11 // pred_check_branch
          %420 = sbr.rel (%p418) target = $region24
        $region23: #{tpu_custom_call.1} parent=11 // pred_region
          %s422 = ssub.s32 256, 256
          %423 = vsyncadd [#allocation9], %s422
          %s424 = sshll.u32 [#allocation10], 4
          %s425 = int_to_ptr.vmem [resolvable:$true] %s424
          %430 = dma.hbm_to_vmem [thread:$0]  %s4, 256, %s425, [#allocation9], 64, 64, 4
        $region24: #{tpu_custom_call.1} parent=11 // pred_fallthru
          _
        // Predicated region
        $region25: #{tpu_custom_call.1} parent=11 // pred_check
          %p431 = pneg %p185
        $region26: #{tpu_custom_call.1} parent=11 // pred_check_branch
          %433 = sbr.rel (%p431) target = $region28
        $region27: #{tpu_custom_call.1} parent=11 // pred_region
          %s435 = ssub.s32 256, 256
          %436 = vsyncadd [#allocation12], %s435
          %s437 = sshll.u32 [#allocation11], 4
          %s438 = int_to_ptr.vmem [resolvable:$true] %s437
          %443 = dma.hbm_to_vmem [thread:$0]  %s5, 256, %s438, [#allocation12], 64, 64, 4
        $region28: #{tpu_custom_call.1} parent=11 // pred_fallthru
          _
        // Predicated region
        $region29: #{tpu_custom_call.1} parent=11 // pred_check
          %p444 = pneg %p206
        $region30: #{tpu_custom_call.1} parent=11 // pred_check_branch
          %446 = sbr.rel (%p444) target = $region32
        $region31: #{tpu_custom_call.1} parent=11 // pred_region
          %s448 = ssub.s32 256, 256
          %449 = vsyncadd [#allocation12], %s448
          %s450 = sshll.u32 [#allocation13], 4
          %s451 = int_to_ptr.vmem [resolvable:$true] %s450
          %456 = dma.hbm_to_vmem [thread:$0]  %s6, 256, %s451, [#allocation12], 64, 64, 4
        $region32: #{tpu_custom_call.1} parent=11 // pred_fallthru
          _
        // Predicated region
        $region33: #{tpu_custom_call.1} parent=11 // pred_check
          %p457 = pneg %p227
        $region34: #{tpu_custom_call.1} parent=11 // pred_check_branch
          %459 = sbr.rel (%p457) target = $region36
        $region35: #{tpu_custom_call.1} parent=11 // pred_region
          %s461 = ssub.s32 256, 256
          %462 = vsyncadd [#allocation15], %s461
          %s463 = sshll.u32 [#allocation14], 4
          %s464 = int_to_ptr.vmem [resolvable:$true] %s463
          %469 = dma.hbm_to_vmem [thread:$0]  %s7, 256, %s464, [#allocation15], 64, 64, 4
        $region36: #{tpu_custom_call.1} parent=11 // pred_fallthru
          _
        // Predicated region
        $region37: #{tpu_custom_call.1} parent=11 // pred_check
          %p470 = pneg %p248
        $region38: #{tpu_custom_call.1} parent=11 // pred_check_branch
          %472 = sbr.rel (%p470) target = $region40
        $region39: #{tpu_custom_call.1} parent=11 // pred_region
          %s474 = ssub.s32 16, 16
          %475 = vsyncadd [#allocation15], %s474
          %s477 = sshll.u32 [#allocation16], 4
          %s478 = int_to_ptr.vmem [resolvable:$true] %s477
          %480 = dma.hbm_to_vmem [thread:$0]  %s8, 16, %s478, [#allocation15]
        $region40: #{tpu_custom_call.1} parent=11 // pred_fallthru
          _
        // Predicated region
        $region41: #{tpu_custom_call.1} parent=11 // pred_check
          %p481 = pneg %p269
        $region42: #{tpu_custom_call.1} parent=11 // pred_check_branch
          %483 = sbr.rel (%p481) target = $region44
        $region43: #{tpu_custom_call.1} parent=11 // pred_region
          %s485 = ssub.s32 16, 16
          %486 = vsyncadd [#allocation18], %s485
          %s488 = sshll.u32 [#allocation17], 4
          %s489 = int_to_ptr.vmem [resolvable:$true] %s488
          %491 = dma.hbm_to_vmem [thread:$0]  %s9, 16, %s489, [#allocation18]
        $region44: #{tpu_custom_call.1} parent=11 // pred_fallthru
          _
        // Predicated region
        $region45: #{tpu_custom_call.1} parent=11 // pred_check
          %p492 = pneg %p290
        $region46: #{tpu_custom_call.1} parent=11 // pred_check_branch
          %494 = sbr.rel (%p492) target = $region48
        $region47: #{tpu_custom_call.1} parent=11 // pred_region
          %s496 = ssub.s32 256, 256
          %497 = vsyncadd [#allocation18], %s496
          %s498 = sshll.u32 [#allocation19], 4
          %s499 = int_to_ptr.vmem [resolvable:$true] %s498
          %504 = dma.hbm_to_vmem [thread:$0]  %s10, 256, %s499, [#allocation18], 64, 64, 4
        $region48: #{tpu_custom_call.1} parent=11 // pred_fallthru
          _
        // Predicated region
        $region49: #{tpu_custom_call.1} parent=11 // pred_check
          %p505 = pneg %p311
        $region50: #{tpu_custom_call.1} parent=11 // pred_check_branch
          %507 = sbr.rel (%p505) target = $region52
        $region51: #{tpu_custom_call.1} parent=11 // pred_region
          %s509 = ssub.s32 16, 16
          %510 = vsyncadd [#allocation21], %s509
          %s512 = sshll.u32 [#allocation20], 4
          %s513 = int_to_ptr.vmem [resolvable:$true] %s512
          %515 = dma.hbm_to_vmem [thread:$0]  %s11, 16, %s513, [#allocation21]
        $region52: #{tpu_custom_call.1} parent=11 // pred_fallthru
          _
        // Predicated region
        $region53: #{tpu_custom_call.1} parent=11 // pred_check
          %p516 = pneg %p332
        $region54: #{tpu_custom_call.1} parent=11 // pred_check_branch
          %518 = sbr.rel (%p516) target = $region56
        $region55: #{tpu_custom_call.1} parent=11 // pred_region
          %s520 = ssub.s32 1024, 1024
          %521 = vsyncadd [#allocation21], %s520
          %s522 = sshll.u32 [#allocation22], 4
          %s523 = int_to_ptr.vmem [resolvable:$true] %s522
          %528 = dma.hbm_to_vmem [thread:$0]  %s12, 1024, %s523, [#allocation21], 64, 64, 4
        $region56: #{tpu_custom_call.1} parent=11 // pred_fallthru
          _
        // Predicated region
        $region57: #{tpu_custom_call.1} parent=11 // pred_check
          %p529 = pneg %p353
        $region58: #{tpu_custom_call.1} parent=11 // pred_check_branch
          %531 = sbr.rel (%p529) target = $region60
        $region59: #{tpu_custom_call.1} parent=11 // pred_region
          %s533 = ssub.s32 16, 16
          %534 = vsyncadd [#allocation24], %s533
          %s536 = sshll.u32 [#allocation23], 4
          %s537 = int_to_ptr.vmem [resolvable:$true] %s536
          %539 = dma.hbm_to_vmem [thread:$0]  %s13, 16, %s537, [#allocation24]
        $region60: #{tpu_custom_call.1} parent=11 // pred_fallthru
          _
      $region12: #{tpu_custom_call.1} parent=5 // pred_fallthru
        _
      %p540 = scmp.lt.s32.totalorder %s35, 4
      // Predicated region
      $region61: #{tpu_custom_call.1} parent=5 // pred_check
        %p541 = pneg %p540
      $region62: #{tpu_custom_call.1} parent=5 // pred_check_branch
        %543 = sbr.rel (%p541) target = $region64
      $region63: #{tpu_custom_call.1} parent=5 // pred_region
        // Predicated region
        $region65: #{tpu_custom_call.1} parent=63 // pred_check
          %p544 = pneg %p69
        $region66: #{tpu_custom_call.1} parent=63 // pred_check_branch
          %546 = sbr.rel (%p544) target = $region68
        $region67: #{tpu_custom_call.1} parent=63 // pred_region
          %s547 = sand.u32 %s59, 1
          %s548 = scalar_lea.sflag [#allocation3], %s547
          %s549 = sand.u32 %s59, 1
          %s550 = smul.addr %s549, 8
          %s551 = scalar_lea.vmem [#allocation2], %s550
          %s553 = ssub.s32 128, 128
          %554 = vsyncadd %s548, %s553
          %s555 = smul.addr %s42, 2
          %s556 = sadd.s32 %s43, %s555
          %s557 = smul.addr %s556, 128
          %s558 = scalar_lea.hbm %s0, %s557
          %s560 = sshll.u32 %s551, 4
          %s561 = int_to_ptr.vmem [resolvable:$true] %s560
          %563 = dma.hbm_to_vmem [thread:$0]  %s558, 128, %s561, %s548
        $region68: #{tpu_custom_call.1} parent=63 // pred_fallthru
          _
        // Predicated region
        $region69: #{tpu_custom_call.1} parent=63 // pred_check
          %p564 = pneg %p95
        $region70: #{tpu_custom_call.1} parent=63 // pred_check_branch
          %566 = sbr.rel (%p564) target = $region72
        $region71: #{tpu_custom_call.1} parent=63 // pred_region
          %s567 = sand.u32 %s35, 1
          %s568 = scalar_lea.sflag [#allocation6], %s567
          %s569 = sand.u32 %s85, 1
          %s570 = smul.addr %s569, 16
          %s571 = scalar_lea.vmem [#allocation5], %s570
          %s573 = ssub.s32 256, 256
          %574 = vsyncadd %s568, %s573
          %s575 = smul.addr %s42, 2
          %s576 = smul.addr %s575, 128
          %s577 = scalar_lea.hbm %s1, %s576
          %s578 = sshll.u32 %s571, 4
          %s579 = int_to_ptr.vmem [resolvable:$true] %s578
          %584 = dma.hbm_to_vmem [thread:$0]  %s577, 256, %s579, %s568, 128, 128, 8
        $region72: #{tpu_custom_call.1} parent=63 // pred_fallthru
          _
      $region64: #{tpu_custom_call.1} parent=5 // pred_fallthru
        _
      %p585 = scmp.le.s32.totalorder 1, %s35
      %p586 = scmp.lt.s32.totalorder %s35, 5
      %p587 = pnand %p585, %p586
      %p588 = pneg %p587
      // Predicated region
      $region73: #{tpu_custom_call.1} parent=5 // pred_check
        _
      $region74: #{tpu_custom_call.1} parent=5 // pred_check_branch
        %590 = sbr.rel (%p587) target = $region76
      $region75: #{tpu_custom_call.1} parent=5 // pred_region
        %s591 = ssub.s32 %s35, 1
        %s592 = sand.u32 %s62, 1
        %s593 = scalar_lea.sflag [#allocation3], %s592
        %s594 = sand.u32 %s62, 1
        %s595 = smul.addr %s594, 8
        %s596 = scalar_lea.vmem [#allocation2], %s595
        // Predicated region
        $region77: #{tpu_custom_call.1} parent=75 // pred_check
          %p597 = pneg %p75
        $region78: #{tpu_custom_call.1} parent=75 // pred_check_branch
          %599 = sbr.rel (%p597) target = $region80
        $region79: #{tpu_custom_call.1} parent=75 // pred_region
          %600 = dma.done %s593, 128
        $region80: #{tpu_custom_call.1} parent=75 // pred_fallthru
          _
        %s601 = sand.u32 %s40, 1
        %s602 = scalar_lea.sflag [#allocation6], %s601
        %s603 = sand.u32 %s88, 1
        %s604 = smul.addr %s603, 16
        %s605 = scalar_lea.vmem [#allocation5], %s604
        // Predicated region
        $region81: #{tpu_custom_call.1} parent=75 // pred_check
          %p606 = pneg %p101
        $region82: #{tpu_custom_call.1} parent=75 // pred_check_branch
          %608 = sbr.rel (%p606) target = $region84
        $region83: #{tpu_custom_call.1} parent=75 // pred_region
          %609 = dma.done %s602, 256
        $region84: #{tpu_custom_call.1} parent=75 // pred_fallthru
          _
        // Predicated region
        $region85: #{tpu_custom_call.1} parent=75 // pred_check
          %p610 = pneg %p122
        $region86: #{tpu_custom_call.1} parent=75 // pred_check_branch
          %612 = sbr.rel (%p610) target = $region88
        $region87: #{tpu_custom_call.1} parent=75 // pred_region
          %613 = dma.done [#allocation6], 16
        $region88: #{tpu_custom_call.1} parent=75 // pred_fallthru
          _
        // Predicated region
        $region89: #{tpu_custom_call.1} parent=75 // pred_check
          %p614 = pneg %p143
        $region90: #{tpu_custom_call.1} parent=75 // pred_check_branch
          %616 = sbr.rel (%p614) target = $region92
        $region91: #{tpu_custom_call.1} parent=75 // pred_region
          %617 = dma.done [#allocation9], 16
        $region92: #{tpu_custom_call.1} parent=75 // pred_fallthru
          _
        // Predicated region
        $region93: #{tpu_custom_call.1} parent=75 // pred_check
          %p618 = pneg %p164
        $region94: #{tpu_custom_call.1} parent=75 // pred_check_branch
          %620 = sbr.rel (%p618) target = $region96
        $region95: #{tpu_custom_call.1} parent=75 // pred_region
          %621 = dma.done [#allocation9], 256
        $region96: #{tpu_custom_call.1} parent=75 // pred_fallthru
          _
        // Predicated region
        $region97: #{tpu_custom_call.1} parent=75 // pred_check
          %p622 = pneg %p185
        $region98: #{tpu_custom_call.1} parent=75 // pred_check_branch
          %624 = sbr.rel (%p622) target = $region100
        $region99: #{tpu_custom_call.1} parent=75 // pred_region
          %625 = dma.done [#allocation12], 256
        $region100: #{tpu_custom_call.1} parent=75 // pred_fallthru
          _
        // Predicated region
        $region101: #{tpu_custom_call.1} parent=75 // pred_check
          %p626 = pneg %p206
        $region102: #{tpu_custom_call.1} parent=75 // pred_check_branch
          %628 = sbr.rel (%p626) target = $region104
        $region103: #{tpu_custom_call.1} parent=75 // pred_region
          %629 = dma.done [#allocation12], 256
        $region104: #{tpu_custom_call.1} parent=75 // pred_fallthru
          _
        // Predicated region
        $region105: #{tpu_custom_call.1} parent=75 // pred_check
          %p630 = pneg %p227
        $region106: #{tpu_custom_call.1} parent=75 // pred_check_branch
          %632 = sbr.rel (%p630) target = $region108
        $region107: #{tpu_custom_call.1} parent=75 // pred_region
          %633 = dma.done [#allocation15], 256
        $region108: #{tpu_custom_call.1} parent=75 // pred_fallthru
          _
        // Predicated region
        $region109: #{tpu_custom_call.1} parent=75 // pred_check
          %p634 = pneg %p248
        $region110: #{tpu_custom_call.1} parent=75 // pred_check_branch
          %636 = sbr.rel (%p634) target = $region112
        $region111: #{tpu_custom_call.1} parent=75 // pred_region
          %637 = dma.done [#allocation15], 16
        $region112: #{tpu_custom_call.1} parent=75 // pred_fallthru
          _
        // Predicated region
        $region113: #{tpu_custom_call.1} parent=75 // pred_check
          %p638 = pneg %p269
        $region114: #{tpu_custom_call.1} parent=75 // pred_check_branch
          %640 = sbr.rel (%p638) target = $region116
        $region115: #{tpu_custom_call.1} parent=75 // pred_region
          %641 = dma.done [#allocation18], 16
        $region116: #{tpu_custom_call.1} parent=75 // pred_fallthru
          _
        // Predicated region
        $region117: #{tpu_custom_call.1} parent=75 // pred_check
          %p642 = pneg %p290
        $region118: #{tpu_custom_call.1} parent=75 // pred_check_branch
          %644 = sbr.rel (%p642) target = $region120
        $region119: #{tpu_custom_call.1} parent=75 // pred_region
          %645 = dma.done [#allocation18], 256
        $region120: #{tpu_custom_call.1} parent=75 // pred_fallthru
          _
        // Predicated region
        $region121: #{tpu_custom_call.1} parent=75 // pred_check
          %p646 = pneg %p311
        $region122: #{tpu_custom_call.1} parent=75 // pred_check_branch
          %648 = sbr.rel (%p646) target = $region124
        $region123: #{tpu_custom_call.1} parent=75 // pred_region
          %649 = dma.done [#allocation21], 16
        $region124: #{tpu_custom_call.1} parent=75 // pred_fallthru
          _
        // Predicated region
        $region125: #{tpu_custom_call.1} parent=75 // pred_check
          %p650 = pneg %p332
        $region126: #{tpu_custom_call.1} parent=75 // pred_check_branch
          %652 = sbr.rel (%p650) target = $region128
        $region127: #{tpu_custom_call.1} parent=75 // pred_region
          %653 = dma.done [#allocation21], 1024
        $region128: #{tpu_custom_call.1} parent=75 // pred_fallthru
          _
        // Predicated region
        $region129: #{tpu_custom_call.1} parent=75 // pred_check
          %p654 = pneg %p353
        $region130: #{tpu_custom_call.1} parent=75 // pred_check_branch
          %656 = sbr.rel (%p654) target = $region132
        $region131: #{tpu_custom_call.1} parent=75 // pred_region
          %657 = dma.done [#allocation24], 16
        $region132: #{tpu_custom_call.1} parent=75 // pred_fallthru
          _
        %s658 = sand.u32 %s62, 1
        %s659 = scalar_lea.sflag [#allocation3], %s658
        %s660 = sand.u32 %s62, 1
        %s661 = smul.addr %s660, 8
        %s662 = scalar_lea.vmem [#allocation2], %s661
        %p663 = pneg %p75
        %p664 = pneg %p72
        %s665 = sand.u32 %s40, 1
        %s666 = scalar_lea.sflag [#allocation6], %s665
        %s667 = sand.u32 %s88, 1
        %s668 = smul.addr %s667, 16
        %s669 = scalar_lea.vmem [#allocation5], %s668
        %p670 = pneg %p101
        %p671 = pneg %p98
        %p672 = pneg %p122
        %p673 = pneg %p119
        %p674 = pneg %p143
        %p675 = pneg %p140
        %p676 = pneg %p164
        %p677 = pneg %p161
        %p678 = pneg %p185
        %p679 = pneg %p182
        %p680 = pneg %p206
        %p681 = pneg %p203
        %p682 = pneg %p227
        %p683 = pneg %p224
        %p684 = pneg %p248
        %p685 = pneg %p245
        %p686 = pneg %p269
        %p687 = pneg %p266
        %p688 = pneg %p290
        %p689 = pneg %p287
        %p690 = pneg %p311
        %p691 = pneg %p308
        %p692 = pneg %p332
        %p693 = pneg %p329
        %p694 = pneg %p353
        %p695 = pneg %p350
        %p696 = pneg %p381
        %p697 = pneg %p378
        %s698 = sand.u32 %s368, 1
        %s699 = scalar_lea.sflag [#allocation4], %s698
        %s700 = sand.u32 %s368, 1
        %s701 = smul.addr %s700, 8
        %s702 = scalar_lea.vmem [#allocation25], %s701
        %v704 = vld [vmem:[#allocation7] sm:$0x1]
        %v705 = vld [vmem:[#allocation8] sm:$0x1]
        %v706 = vld [vmem:[%s596] sm:$0xff]
        %vm707 = vcmask 261120
        %v708 = vsel %vm707, %v706, 0.0
        %709 = vadd.xlane.f32.xlu0 %v708
        %v710 = vpop.xlane.xlu0 %709
        %v711 = vrcp.pop 32.0
        %v712 = vmul.f32 %v710, %v711
        %v713 = vsub.f32 %v706, %v712
        %v714 = vmul.f32 %v713, %v713
        %v715 = vsel %vm707, %v714, 0.0
        %716 = vadd.xlane.f32.xlu0 %v715
        %v717 = vpop.xlane.xlu0 %716
        %v718 = vmul.f32 %v717, %v711
        %v719 = vadd.f32 %v718, 1e-05
        %v720 = vrsqrt.pop %v719
        %v721 = vmul.f32 %v713, %v720
        %v723 = vlaneseq
        %v724 = vshrl.u32 %v723, 7
        %v725 = vsub.s32 0, %v724
        %v726 = vrot.slane %v704, %v725
        %v728 = vmul.f32 %v721, %v726
        %v730 = vlaneseq
        %v731 = vshrl.u32 %v730, 7
        %v732 = vsub.s32 0, %v731
        %v733 = vrot.slane %v705, %v732
        %v735 = vadd.f32 %v728, %v733
        %v736 = vmul.f32 %v735, 0.35355338
        %v737 = vpack.c.bf16 %v736, %v736
        %v738 = vld [vmem:[#allocation10] sm:$0xf]
        %v739 = vld [vmem:[#allocation10 + $0x4] sm:$0xf]
        %v740 = vld [vmem:[#allocation10 + $0x8] sm:$0xf]
        %v741 = vld [vmem:[#allocation10 + $0xc] sm:$0xf]
        %v746 = vunpack.c.l.b16 %v738
        %v747 = vunpack.c.l.b16 %v739
        %v748 = vunpack.c.l.b16 %v740
        %v749 = vunpack.c.l.b16 %v741
        %v750 = vpack.c.b16 %v747, %v746
        %v751 = vpack.c.b16 %v749, %v748
        %v755 = vsel %vm707, %v737, 0
        %757 = vmatprep.subr.bf16.mxu0 0
        %758 = vmatpush1.bf16.msra.mxu0 %v750
        %759 = vmatprep.subr.bf16.mxu0 0
        %760 = vmatpush1.bf16.msra.mxu0 %v751
        %761 = vmatprep.subr.bf16.mxu0 0
        %762 = vmatpush1.bf16.msra.mxu0 0
        %763 = vmatprep.subr.bf16.mxu0 0
        %764 = vmatpush1.bf16.msra.mxu0 0
        %765 = vmatprep.subr.bf16.mxu0 0
        %766 = vmatpush1.bf16.msra.mxu0 0
        %767 = vmatprep.subr.bf16.mxu0 0
        %768 = vmatpush1.bf16.msra.mxu0 0
        %769 = vmatprep.subr.bf16.mxu0 0
        %770 = vmatpush1.bf16.msra.mxu0 0
        %771 = vmatprep.subr.bf16.mxu0 0
        %772 = vmatpush1.bf16.msra.mxu0 0
        %773 = vmatprep.subr.bf16.mxu0 0
        %774 = vmatpush1.bf16.msra.mxu0 0
        %775 = vmatprep.subr.bf16.mxu0 0
        %776 = vmatpush1.bf16.msra.mxu0 0
        %777 = vmatprep.subr.bf16.mxu0 0
        %778 = vmatpush1.bf16.msra.mxu0 0
        %779 = vmatprep.subr.bf16.mxu0 0
        %780 = vmatpush1.bf16.msra.mxu0 0
        %781 = vmatprep.subr.bf16.mxu0 0
        %782 = vmatpush1.bf16.msra.mxu0 0
        %783 = vmatprep.subr.bf16.mxu0 0
        %784 = vmatpush1.bf16.msra.mxu0 0
        %785 = vmatprep.subr.bf16.mxu0 0
        %786 = vmatpush1.bf16.msra.mxu0 0
        %787 = vmatprep.subr.bf16.mxu0 0
        %788 = vmatpush1.bf16.msra.mxu0 0
        %789 = vmatprep.mubr.bf16.mxu0 0
        %790 = vmatmul.mubr.bf16.gmra.mrb[0].mxu0 %v755
        %v791 = vpop.f32.mrb[0].mxu0
        %v792 = vadd.f32 0.0, %v791
        %v793 = vpop.f32.mrb[0].mxu0
        %v794 = vpop.f32.mrb[0].mxu0
        %v795 = vpop.f32.mrb[0].mxu0
        %796 = vdwg.mxu0
        %798 = vrot.lane.b32.xlu0 %v792, 120
        %v799 = vpop.permute.xlu0 %798
        %801 = vrot.lane.b32.xlu0 %v792, 112
        %v802 = vpop.permute.xlu0 %801
        %804 = vrot.lane.b32.xlu0 %v792, 104
        %v805 = vpop.permute.xlu0 %804
        %v807 = vcombine.low %v792, %v802
        %v808 = vcombine.high %v792, %v802
        %v810 = vunpack.c.l.s4 1983009808
        %v811 = vunpack.c.0.s8 %v810
        %v812 = vlaneseq
        %v813 = vshrl.u32 %v812, 7
        %v814 = vsub.s32 %v811, %v813
        %v815 = vrot.slane %v807, %v814
        %v817 = vunpack.c.l.s4 1983009808
        %v818 = vunpack.c.0.s8 %v817
        %v819 = vlaneseq
        %v820 = vshrl.u32 %v819, 7
        %v821 = vsub.s32 %v818, %v820
        %v822 = vrot.slane %v808, %v821
        %v823 = vcombine.low %v799, %v805
        %v824 = vcombine.high %v799, %v805
        %v826 = vunpack.c.l.s4 1983009808
        %v827 = vunpack.c.0.s8 %v826
        %v828 = vlaneseq
        %v829 = vshrl.u32 %v828, 7
        %v830 = vsub.s32 %v827, %v829
        %v831 = vrot.slane %v823, %v830
        %v833 = vunpack.c.l.s4 1983009808
        %v834 = vunpack.c.0.s8 %v833
        %v835 = vlaneseq
        %v836 = vshrl.u32 %v835, 7
        %v837 = vsub.s32 %v834, %v836
        %v838 = vrot.slane %v824, %v837
        %v839 = vcombine.low %v815, %v831
        %v840 = vcombine.high %v815, %v831
        %v842 = vunpack.c.l.s4 1934713408
        %v843 = vunpack.c.0.s8 %v842
        %v844 = vlaneseq
        %v845 = vshrl.u32 %v844, 7
        %v846 = vsub.s32 %v843, %v845
        %v847 = vrot.slane %v839, %v846
        %v849 = vunpack.c.l.s4 1934713408
        %v850 = vunpack.c.0.s8 %v849
        %v851 = vlaneseq
        %v852 = vshrl.u32 %v851, 7
        %v853 = vsub.s32 %v850, %v852
        %v854 = vrot.slane %v840, %v853
        %v855 = vcombine.low %v822, %v838
        %v856 = vcombine.high %v822, %v838
        %v858 = vunpack.c.l.s4 1934713408
        %v859 = vunpack.c.0.s8 %v858
        %v860 = vlaneseq
        %v861 = vshrl.u32 %v860, 7
        %v862 = vsub.s32 %v859, %v861
        %v863 = vrot.slane %v855, %v862
        %v865 = vunpack.c.l.s4 1934713408
        %v866 = vunpack.c.0.s8 %v865
        %v867 = vlaneseq
        %v868 = vshrl.u32 %v867, 7
        %v869 = vsub.s32 %v866, %v868
        %v870 = vrot.slane %v856, %v869
        %v871 = vcombine.high %v847, 0.0
        %v872 = vcombine.high %v854, 0.0
        %v873 = vcombine.high %v863, 0.0
        %v874 = vcombine.high %v870, 0.0
        %v875 = vcombine.low %v847, %v854
        %v877 = vunpack.c.l.s4 1983009808
        %v878 = vunpack.c.0.s8 %v877
        %v879 = vlaneseq
        %v880 = vshrl.u32 %v879, 7
        %v881 = vsub.s32 %v878, %v880
        %v882 = vrot.slane %v875, %v881
        %v883 = vcombine.low %v871, %v872
        %v885 = vunpack.c.l.s4 1983009808
        %v886 = vunpack.c.0.s8 %v885
        %v887 = vlaneseq
        %v888 = vshrl.u32 %v887, 7
        %v889 = vsub.s32 %v886, %v888
        %v890 = vrot.slane %v883, %v889
        %v891 = vcombine.low %v863, %v870
        %v893 = vunpack.c.l.s4 1983009808
        %v894 = vunpack.c.0.s8 %v893
        %v895 = vlaneseq
        %v896 = vshrl.u32 %v895, 7
        %v897 = vsub.s32 %v894, %v896
        %v898 = vrot.slane %v891, %v897
        %v899 = vcombine.low %v873, %v874
        %v901 = vunpack.c.l.s4 1983009808
        %v902 = vunpack.c.0.s8 %v901
        %v903 = vlaneseq
        %v904 = vshrl.u32 %v903, 7
        %v905 = vsub.s32 %v902, %v904
        %v906 = vrot.slane %v899, %v905
        %v907 = vcombine.low %v882, %v890
        %v908 = vcombine.high %v882, %v890
        %v910 = vunpack.c.l.s4 1934713408
        %v911 = vunpack.c.0.s8 %v910
        %v912 = vlaneseq
        %v913 = vshrl.u32 %v912, 7
        %v914 = vsub.s32 %v911, %v913
        %v915 = vrot.slane %v907, %v914
        %v917 = vunpack.c.l.s4 1934713408
        %v918 = vunpack.c.0.s8 %v917
        %v919 = vlaneseq
        %v920 = vshrl.u32 %v919, 7
        %v921 = vsub.s32 %v918, %v920
        %v922 = vrot.slane %v908, %v921
        %v923 = vcombine.low %v898, %v906
        %v924 = vcombine.high %v898, %v906
        %v926 = vunpack.c.l.s4 1934713408
        %v927 = vunpack.c.0.s8 %v926
        %v928 = vlaneseq
        %v929 = vshrl.u32 %v928, 7
        %v930 = vsub.s32 %v927, %v929
        %v931 = vrot.slane %v923, %v930
        %v933 = vunpack.c.l.s4 1934713408
        %v934 = vunpack.c.0.s8 %v933
        %v935 = vlaneseq
        %v936 = vshrl.u32 %v935, 7
        %v937 = vsub.s32 %v934, %v936
        %v938 = vrot.slane %v924, %v937
        %v939 = vcombine.low %v915, %v931
        %v940 = vcombine.high %v915, %v931
        %v941 = vcombine.low %v922, %v938
        %v942 = vcombine.high %v922, %v938
        %v943 = vpack.c.bf16 %v939, %v939
        %v944 = vpack.c.bf16 %v940, %v940
        %v945 = vpack.c.bf16 %v941, %v941
        %v946 = vpack.c.bf16 %v942, %v942
        %s947 = smul.u32 %s45, 8
        %v948 = vlaneseq
        %v949 = vshrl.u32 %v948, 7
        %v950 = vstv %s947
        %v951 = vadd.s32 %v950, %v949
        %s952 = sadd.s32 %s45, 1
        // While loop
        $region133: #{tpu_custom_call.1} parent=75 // loop_pre_header
          _
        $region134: #{tpu_custom_call.1} parent=75 // loop_header
          %s954 = sphi 0, %s956
          %p955 = scmp.ge.s32.totalorder %s954, %s952
          %v959 = vphi -inf, %v1613
          %v960 = vphi -inf, %v1614
          %v961 = vphi -inf, %v1615
          %v962 = vphi -inf, %v1616
          %v963 = vphi 0.0, %v1657
          %v964 = vphi 0.0, %v1658
          %v965 = vphi 0.0, %v1659
          %v966 = vphi 0.0, %v1660
          %v967 = vphi 0.0, %v1854
          %v968 = vphi 0.0, %v1855
          %v969 = vphi 0.0, %v1856
          %v970 = vphi 0.0, %v1857
        $region135: #{tpu_custom_call.1} parent=75 // loop_header_branch
          %958 = sbr.rel (%p955) target = $region139
        $region136: #{tpu_custom_call.1} parent=75 // loop_body
          %s971 = smul.u32 %s954, 8
          %s972 = scalar_lea.vmem %s605, %s971 [#allocation5]
          %v973 = vld [vmem:[%s972] sm:$0xff]
          %v974 = vsel %vm707, %v973, 0.0
          %975 = vadd.xlane.f32.xlu0 %v974
          %v976 = vpop.xlane.xlu0 %975
          %v977 = vmul.f32 %v976, %v711
          %v978 = vsub.f32 %v973, %v977
          %v979 = vmul.f32 %v978, %v978
          %v980 = vsel %vm707, %v979, 0.0
          %981 = vadd.xlane.f32.xlu0 %v980
          %v982 = vpop.xlane.xlu0 %981
          %v983 = vmul.f32 %v982, %v711
          %v984 = vadd.f32 %v983, 1e-05
          %v985 = vrsqrt.pop %v984
          %v986 = vmul.f32 %v978, %v985
          %v987 = vmul.f32 %v986, %v726
          %v988 = vadd.f32 %v987, %v733
          %v989 = vpack.c.bf16 %v988, %v988
          %v990 = vld [vmem:[#allocation11] sm:$0xf]
          %v991 = vld [vmem:[#allocation11 + $0x4] sm:$0xf]
          %v992 = vld [vmem:[#allocation11 + $0x8] sm:$0xf]
          %v993 = vld [vmem:[#allocation11 + $0xc] sm:$0xf]
          %v998 = vunpack.c.l.b16 %v990
          %v999 = vunpack.c.l.b16 %v991
          %v1000 = vunpack.c.l.b16 %v992
          %v1001 = vunpack.c.l.b16 %v993
          %v1002 = vpack.c.b16 %v999, %v998
          %v1003 = vpack.c.b16 %v1001, %v1000
          %v1007 = vsel %vm707, %v989, 0
          %1009 = vmatprep.subr.bf16.mxu0 0
          %1010 = vmatpush1.bf16.msra.mxu0 %v1002
          %1011 = vmatprep.subr.bf16.mxu0 0
          %1012 = vmatpush1.bf16.msra.mxu0 %v1003
          %1013 = vmatprep.subr.bf16.mxu0 0
          %1014 = vmatpush1.bf16.msra.mxu0 0
          %1015 = vmatprep.subr.bf16.mxu0 0
          %1016 = vmatpush1.bf16.msra.mxu0 0
          %1017 = vmatprep.subr.bf16.mxu0 0
          %1018 = vmatpush1.bf16.msra.mxu0 0
          %1019 = vmatprep.subr.bf16.mxu0 0
          %1020 = vmatpush1.bf16.msra.mxu0 0
          %1021 = vmatprep.subr.bf16.mxu0 0
          %1022 = vmatpush1.bf16.msra.mxu0 0
          %1023 = vmatprep.subr.bf16.mxu0 0
          %1024 = vmatpush1.bf16.msra.mxu0 0
          %1025 = vmatprep.subr.bf16.mxu0 0
          %1026 = vmatpush1.bf16.msra.mxu0 0
          %1027 = vmatprep.subr.bf16.mxu0 0
          %1028 = vmatpush1.bf16.msra.mxu0 0
          %1029 = vmatprep.subr.bf16.mxu0 0
          %1030 = vmatpush1.bf16.msra.mxu0 0
          %1031 = vmatprep.subr.bf16.mxu0 0
          %1032 = vmatpush1.bf16.msra.mxu0 0
          %1033 = vmatprep.subr.bf16.mxu0 0
          %1034 = vmatpush1.bf16.msra.mxu0 0
          %1035 = vmatprep.subr.bf16.mxu0 0
          %1036 = vmatpush1.bf16.msra.mxu0 0
          %1037 = vmatprep.subr.bf16.mxu0 0
          %1038 = vmatpush1.bf16.msra.mxu0 0
          %1039 = vmatprep.subr.bf16.mxu0 0
          %1040 = vmatpush1.bf16.msra.mxu0 0
          %1041 = vmatprep.mubr.bf16.mxu0 0
          %1042 = vmatmul.mubr.bf16.gmra.mrb[0].mxu0 %v1007
          %v1043 = vpop.f32.mrb[0].mxu0
          %v1044 = vadd.f32 0.0, %v1043
          %v1045 = vpop.f32.mrb[0].mxu0
          %v1046 = vpop.f32.mrb[0].mxu0
          %v1047 = vpop.f32.mrb[0].mxu0
          %1048 = vdwg.mxu0
          %v1049 = vld [vmem:[#allocation13] sm:$0xf]
          %v1050 = vld [vmem:[#allocation13 + $0x4] sm:$0xf]
          %v1051 = vld [vmem:[#allocation13 + $0x8] sm:$0xf]
          %v1052 = vld [vmem:[#allocation13 + $0xc] sm:$0xf]
          %v1057 = vunpack.c.l.b16 %v1049
          %v1058 = vunpack.c.l.b16 %v1050
          %v1059 = vunpack.c.l.b16 %v1051
          %v1060 = vunpack.c.l.b16 %v1052
          %v1061 = vpack.c.b16 %v1058, %v1057
          %v1062 = vpack.c.b16 %v1060, %v1059
          %1065 = vmatprep.subr.bf16.mxu0 0
          %1066 = vmatpush1.bf16.msra.mxu0 %v1061
          %1067 = vmatprep.subr.bf16.mxu0 0
          %1068 = vmatpush1.bf16.msra.mxu0 %v1062
          %1069 = vmatprep.subr.bf16.mxu0 0
          %1070 = vmatpush1.bf16.msra.mxu0 0
          %1071 = vmatprep.subr.bf16.mxu0 0
          %1072 = vmatpush1.bf16.msra.mxu0 0
          %1073 = vmatprep.subr.bf16.mxu0 0
          %1074 = vmatpush1.bf16.msra.mxu0 0
          %1075 = vmatprep.subr.bf16.mxu0 0
          %1076 = vmatpush1.bf16.msra.mxu0 0
          %1077 = vmatprep.subr.bf16.mxu0 0
          %1078 = vmatpush1.bf16.msra.mxu0 0
          %1079 = vmatprep.subr.bf16.mxu0 0
          %1080 = vmatpush1.bf16.msra.mxu0 0
          %1081 = vmatprep.subr.bf16.mxu0 0
          %1082 = vmatpush1.bf16.msra.mxu0 0
          %1083 = vmatprep.subr.bf16.mxu0 0
          %1084 = vmatpush1.bf16.msra.mxu0 0
          %1085 = vmatprep.subr.bf16.mxu0 0
          %1086 = vmatpush1.bf16.msra.mxu0 0
          %1087 = vmatprep.subr.bf16.mxu0 0
          %1088 = vmatpush1.bf16.msra.mxu0 0
          %1089 = vmatprep.subr.bf16.mxu0 0
          %1090 = vmatpush1.bf16.msra.mxu0 0
          %1091 = vmatprep.subr.bf16.mxu0 0
          %1092 = vmatpush1.bf16.msra.mxu0 0
          %1093 = vmatprep.subr.bf16.mxu0 0
          %1094 = vmatpush1.bf16.msra.mxu0 0
          %1095 = vmatprep.subr.bf16.mxu0 0
          %1096 = vmatpush1.bf16.msra.mxu0 0
          %1097 = vmatprep.mubr.bf16.mxu0 0
          %1098 = vmatmul.mubr.bf16.gmra.mrb[0].mxu0 %v1007
          %v1099 = vpop.f32.mrb[0].mxu0
          %v1100 = vadd.f32 0.0, %v1099
          %v1101 = vpop.f32.mrb[0].mxu0
          %v1102 = vpop.f32.mrb[0].mxu0
          %v1103 = vpop.f32.mrb[0].mxu0
          %1104 = vdwg.mxu0
          %1106 = vrot.lane.b32.xlu0 %v1044, 120
          %v1107 = vpop.permute.xlu0 %1106
          %1109 = vrot.lane.b32.xlu0 %v1044, 112
          %v1110 = vpop.permute.xlu0 %1109
          %1112 = vrot.lane.b32.xlu0 %v1044, 104
          %v1113 = vpop.permute.xlu0 %1112
          %v1115 = vcombine.low %v1044, %v1110
          %v1116 = vcombine.high %v1044, %v1110
          %v1118 = vunpack.c.l.s4 1983009808
          %v1119 = vunpack.c.0.s8 %v1118
          %v1120 = vlaneseq
          %v1121 = vshrl.u32 %v1120, 7
          %v1122 = vsub.s32 %v1119, %v1121
          %v1123 = vrot.slane %v1115, %v1122
          %v1125 = vunpack.c.l.s4 1983009808
          %v1126 = vunpack.c.0.s8 %v1125
          %v1127 = vlaneseq
          %v1128 = vshrl.u32 %v1127, 7
          %v1129 = vsub.s32 %v1126, %v1128
          %v1130 = vrot.slane %v1116, %v1129
          %v1131 = vcombine.low %v1107, %v1113
          %v1132 = vcombine.high %v1107, %v1113
          %v1134 = vunpack.c.l.s4 1983009808
          %v1135 = vunpack.c.0.s8 %v1134
          %v1136 = vlaneseq
          %v1137 = vshrl.u32 %v1136, 7
          %v1138 = vsub.s32 %v1135, %v1137
          %v1139 = vrot.slane %v1131, %v1138
          %v1141 = vunpack.c.l.s4 1983009808
          %v1142 = vunpack.c.0.s8 %v1141
          %v1143 = vlaneseq
          %v1144 = vshrl.u32 %v1143, 7
          %v1145 = vsub.s32 %v1142, %v1144
          %v1146 = vrot.slane %v1132, %v1145
          %v1147 = vcombine.low %v1123, %v1139
          %v1148 = vcombine.high %v1123, %v1139
          %v1150 = vunpack.c.l.s4 1934713408
          %v1151 = vunpack.c.0.s8 %v1150
          %v1152 = vlaneseq
          %v1153 = vshrl.u32 %v1152, 7
          %v1154 = vsub.s32 %v1151, %v1153
          %v1155 = vrot.slane %v1147, %v1154
          %v1157 = vunpack.c.l.s4 1934713408
          %v1158 = vunpack.c.0.s8 %v1157
          %v1159 = vlaneseq
          %v1160 = vshrl.u32 %v1159, 7
          %v1161 = vsub.s32 %v1158, %v1160
          %v1162 = vrot.slane %v1148, %v1161
          %v1163 = vcombine.low %v1130, %v1146
          %v1164 = vcombine.high %v1130, %v1146
          %v1166 = vunpack.c.l.s4 1934713408
          %v1167 = vunpack.c.0.s8 %v1166
          %v1168 = vlaneseq
          %v1169 = vshrl.u32 %v1168, 7
          %v1170 = vsub.s32 %v1167, %v1169
          %v1171 = vrot.slane %v1163, %v1170
          %v1173 = vunpack.c.l.s4 1934713408
          %v1174 = vunpack.c.0.s8 %v1173
          %v1175 = vlaneseq
          %v1176 = vshrl.u32 %v1175, 7
          %v1177 = vsub.s32 %v1174, %v1176
          %v1178 = vrot.slane %v1164, %v1177
          %v1179 = vcombine.high %v1155, 0.0
          %v1180 = vcombine.high %v1162, 0.0
          %v1181 = vcombine.high %v1171, 0.0
          %v1182 = vcombine.high %v1178, 0.0
          %v1183 = vcombine.low %v1155, %v1162
          %v1185 = vunpack.c.l.s4 1983009808
          %v1186 = vunpack.c.0.s8 %v1185
          %v1187 = vlaneseq
          %v1188 = vshrl.u32 %v1187, 7
          %v1189 = vsub.s32 %v1186, %v1188
          %v1190 = vrot.slane %v1183, %v1189
          %v1191 = vcombine.low %v1179, %v1180
          %v1193 = vunpack.c.l.s4 1983009808
          %v1194 = vunpack.c.0.s8 %v1193
          %v1195 = vlaneseq
          %v1196 = vshrl.u32 %v1195, 7
          %v1197 = vsub.s32 %v1194, %v1196
          %v1198 = vrot.slane %v1191, %v1197
          %v1199 = vcombine.low %v1171, %v1178
          %v1201 = vunpack.c.l.s4 1983009808
          %v1202 = vunpack.c.0.s8 %v1201
          %v1203 = vlaneseq
          %v1204 = vshrl.u32 %v1203, 7
          %v1205 = vsub.s32 %v1202, %v1204
          %v1206 = vrot.slane %v1199, %v1205
          %v1207 = vcombine.low %v1181, %v1182
          %v1209 = vunpack.c.l.s4 1983009808
          %v1210 = vunpack.c.0.s8 %v1209
          %v1211 = vlaneseq
          %v1212 = vshrl.u32 %v1211, 7
          %v1213 = vsub.s32 %v1210, %v1212
          %v1214 = vrot.slane %v1207, %v1213
          %v1215 = vcombine.low %v1190, %v1198
          %v1216 = vcombine.high %v1190, %v1198
          %v1218 = vunpack.c.l.s4 1934713408
          %v1219 = vunpack.c.0.s8 %v1218
          %v1220 = vlaneseq
          %v1221 = vshrl.u32 %v1220, 7
          %v1222 = vsub.s32 %v1219, %v1221
          %v1223 = vrot.slane %v1215, %v1222
          %v1225 = vunpack.c.l.s4 1934713408
          %v1226 = vunpack.c.0.s8 %v1225
          %v1227 = vlaneseq
          %v1228 = vshrl.u32 %v1227, 7
          %v1229 = vsub.s32 %v1226, %v1228
          %v1230 = vrot.slane %v1216, %v1229
          %v1231 = vcombine.low %v1206, %v1214
          %v1232 = vcombine.high %v1206, %v1214
          %v1234 = vunpack.c.l.s4 1934713408
          %v1235 = vunpack.c.0.s8 %v1234
          %v1236 = vlaneseq
          %v1237 = vshrl.u32 %v1236, 7
          %v1238 = vsub.s32 %v1235, %v1237
          %v1239 = vrot.slane %v1231, %v1238
          %v1241 = vunpack.c.l.s4 1934713408
          %v1242 = vunpack.c.0.s8 %v1241
          %v1243 = vlaneseq
          %v1244 = vshrl.u32 %v1243, 7
          %v1245 = vsub.s32 %v1242, %v1244
          %v1246 = vrot.slane %v1232, %v1245
          %v1247 = vcombine.low %v1223, %v1239
          %v1248 = vcombine.high %v1223, %v1239
          %v1249 = vcombine.low %v1230, %v1246
          %v1250 = vcombine.high %v1230, %v1246
          %v1251 = vpack.c.bf16 %v1247, %v1247
          %v1252 = vpack.c.bf16 %v1248, %v1248
          %v1253 = vpack.c.bf16 %v1249, %v1249
          %v1254 = vpack.c.bf16 %v1250, %v1250
          %1256 = vrot.lane.b32.xlu0 %v1100, 120
          %v1257 = vpop.permute.xlu0 %1256
          %1259 = vrot.lane.b32.xlu0 %v1100, 112
          %v1260 = vpop.permute.xlu0 %1259
          %1262 = vrot.lane.b32.xlu0 %v1100, 104
          %v1263 = vpop.permute.xlu0 %1262
          %v1265 = vcombine.low %v1100, %v1260
          %v1266 = vcombine.high %v1100, %v1260
          %v1268 = vunpack.c.l.s4 1983009808
          %v1269 = vunpack.c.0.s8 %v1268
          %v1270 = vlaneseq
          %v1271 = vshrl.u32 %v1270, 7
          %v1272 = vsub.s32 %v1269, %v1271
          %v1273 = vrot.slane %v1265, %v1272
          %v1275 = vunpack.c.l.s4 1983009808
          %v1276 = vunpack.c.0.s8 %v1275
          %v1277 = vlaneseq
          %v1278 = vshrl.u32 %v1277, 7
          %v1279 = vsub.s32 %v1276, %v1278
          %v1280 = vrot.slane %v1266, %v1279
          %v1281 = vcombine.low %v1257, %v1263
          %v1282 = vcombine.high %v1257, %v1263
          %v1284 = vunpack.c.l.s4 1983009808
          %v1285 = vunpack.c.0.s8 %v1284
          %v1286 = vlaneseq
          %v1287 = vshrl.u32 %v1286, 7
          %v1288 = vsub.s32 %v1285, %v1287
          %v1289 = vrot.slane %v1281, %v1288
          %v1291 = vunpack.c.l.s4 1983009808
          %v1292 = vunpack.c.0.s8 %v1291
          %v1293 = vlaneseq
          %v1294 = vshrl.u32 %v1293, 7
          %v1295 = vsub.s32 %v1292, %v1294
          %v1296 = vrot.slane %v1282, %v1295
          %v1297 = vcombine.low %v1273, %v1289
          %v1298 = vcombine.high %v1273, %v1289
          %v1300 = vunpack.c.l.s4 1934713408
          %v1301 = vunpack.c.0.s8 %v1300
          %v1302 = vlaneseq
          %v1303 = vshrl.u32 %v1302, 7
          %v1304 = vsub.s32 %v1301, %v1303
          %v1305 = vrot.slane %v1297, %v1304
          %v1307 = vunpack.c.l.s4 1934713408
          %v1308 = vunpack.c.0.s8 %v1307
          %v1309 = vlaneseq
          %v1310 = vshrl.u32 %v1309, 7
          %v1311 = vsub.s32 %v1308, %v1310
          %v1312 = vrot.slane %v1298, %v1311
          %v1313 = vcombine.low %v1280, %v1296
          %v1314 = vcombine.high %v1280, %v1296
          %v1316 = vunpack.c.l.s4 1934713408
          %v1317 = vunpack.c.0.s8 %v1316
          %v1318 = vlaneseq
          %v1319 = vshrl.u32 %v1318, 7
          %v1320 = vsub.s32 %v1317, %v1319
          %v1321 = vrot.slane %v1313, %v1320
          %v1323 = vunpack.c.l.s4 1934713408
          %v1324 = vunpack.c.0.s8 %v1323
          %v1325 = vlaneseq
          %v1326 = vshrl.u32 %v1325, 7
          %v1327 = vsub.s32 %v1324, %v1326
          %v1328 = vrot.slane %v1314, %v1327
          %v1329 = vcombine.high %v1305, 0.0
          %v1330 = vcombine.high %v1312, 0.0
          %v1331 = vcombine.high %v1321, 0.0
          %v1332 = vcombine.high %v1328, 0.0
          %v1333 = vcombine.low %v1305, %v1312
          %v1335 = vunpack.c.l.s4 1983009808
          %v1336 = vunpack.c.0.s8 %v1335
          %v1337 = vlaneseq
          %v1338 = vshrl.u32 %v1337, 7
          %v1339 = vsub.s32 %v1336, %v1338
          %v1340 = vrot.slane %v1333, %v1339
          %v1341 = vcombine.low %v1329, %v1330
          %v1343 = vunpack.c.l.s4 1983009808
          %v1344 = vunpack.c.0.s8 %v1343
          %v1345 = vlaneseq
          %v1346 = vshrl.u32 %v1345, 7
          %v1347 = vsub.s32 %v1344, %v1346
          %v1348 = vrot.slane %v1341, %v1347
          %v1349 = vcombine.low %v1321, %v1328
          %v1351 = vunpack.c.l.s4 1983009808
          %v1352 = vunpack.c.0.s8 %v1351
          %v1353 = vlaneseq
          %v1354 = vshrl.u32 %v1353, 7
          %v1355 = vsub.s32 %v1352, %v1354
          %v1356 = vrot.slane %v1349, %v1355
          %v1357 = vcombine.low %v1331, %v1332
          %v1359 = vunpack.c.l.s4 1983009808
          %v1360 = vunpack.c.0.s8 %v1359
          %v1361 = vlaneseq
          %v1362 = vshrl.u32 %v1361, 7
          %v1363 = vsub.s32 %v1360, %v1362
          %v1364 = vrot.slane %v1357, %v1363
          %v1365 = vcombine.low %v1340, %v1348
          %v1366 = vcombine.high %v1340, %v1348
          %v1368 = vunpack.c.l.s4 1934713408
          %v1369 = vunpack.c.0.s8 %v1368
          %v1370 = vlaneseq
          %v1371 = vshrl.u32 %v1370, 7
          %v1372 = vsub.s32 %v1369, %v1371
          %v1373 = vrot.slane %v1365, %v1372
          %v1375 = vunpack.c.l.s4 1934713408
          %v1376 = vunpack.c.0.s8 %v1375
          %v1377 = vlaneseq
          %v1378 = vshrl.u32 %v1377, 7
          %v1379 = vsub.s32 %v1376, %v1378
          %v1380 = vrot.slane %v1366, %v1379
          %v1381 = vcombine.low %v1356, %v1364
          %v1382 = vcombine.high %v1356, %v1364
          %v1384 = vunpack.c.l.s4 1934713408
          %v1385 = vunpack.c.0.s8 %v1384
          %v1386 = vlaneseq
          %v1387 = vshrl.u32 %v1386, 7
          %v1388 = vsub.s32 %v1385, %v1387
          %v1389 = vrot.slane %v1381, %v1388
          %v1391 = vunpack.c.l.s4 1934713408
          %v1392 = vunpack.c.0.s8 %v1391
          %v1393 = vlaneseq
          %v1394 = vshrl.u32 %v1393, 7
          %v1395 = vsub.s32 %v1392, %v1394
          %v1396 = vrot.slane %v1382, %v1395
          %v1397 = vcombine.low %v1373, %v1389
          %v1398 = vcombine.high %v1373, %v1389
          %v1399 = vcombine.low %v1380, %v1396
          %v1400 = vcombine.high %v1380, %v1396
          %v1401 = vpack.c.bf16 %v1397, %v1397
          %v1402 = vpack.c.bf16 %v1398, %v1398
          %v1403 = vpack.c.bf16 %v1399, %v1399
          %v1404 = vpack.c.bf16 %v1400, %v1400
          %vm1405 = vcmask 64512
          %v1407 = vsel %vm1405, %v943, 0
          %v1410 = vsel %vm1405, %v1251, 0
          %1412 = vmatprep.subr.bf16.mxu0 0
          %1413 = vmatpush1.bf16.xpose.msra.mxu0 %v1410
          %1414 = vmatprep.subr.bf16.mxu0 0
          %1415 = vmatpush1.bf16.xpose.msra.mxu0 0
          %1416 = vmatprep.subr.bf16.mxu0 0
          %1417 = vmatpush1.bf16.xpose.msra.mxu0 0
          %1418 = vmatprep.subr.bf16.mxu0 0
          %1419 = vmatpush1.bf16.xpose.msra.mxu0 0
          %1420 = vmatprep.subr.bf16.mxu0 0
          %1421 = vmatpush1.bf16.xpose.msra.mxu0 0
          %1422 = vmatprep.subr.bf16.mxu0 0
          %1423 = vmatpush1.bf16.xpose.msra.mxu0 0
          %1424 = vmatprep.subr.bf16.mxu0 0
          %1425 = vmatpush1.bf16.xpose.msra.mxu0 0
          %1426 = vmatprep.subr.bf16.mxu0 0
          %1427 = vmatpush1.bf16.xpose.msra.mxu0 0
          %1428 = vmatprep.subr.bf16.mxu0 0
          %1429 = vmatpush1.bf16.xpose.msra.mxu0 0
          %1430 = vmatprep.subr.bf16.mxu0 0
          %1431 = vmatpush1.bf16.xpose.msra.mxu0 0
          %1432 = vmatprep.subr.bf16.mxu0 0
          %1433 = vmatpush1.bf16.xpose.msra.mxu0 0
          %1434 = vmatprep.subr.bf16.mxu0 0
          %1435 = vmatpush1.bf16.xpose.msra.mxu0 0
          %1436 = vmatprep.subr.bf16.mxu0 0
          %1437 = vmatpush1.bf16.xpose.msra.mxu0 0
          %1438 = vmatprep.subr.bf16.mxu0 0
          %1439 = vmatpush1.bf16.xpose.msra.mxu0 0
          %1440 = vmatprep.subr.bf16.mxu0 0
          %1441 = vmatpush1.bf16.xpose.msra.mxu0 0
          %1442 = vmatprep.subr.bf16.mxu0 0
          %1443 = vmatpush1.bf16.xpose.msra.mxu0 0
          %1444 = vmatprep.mubr.bf16.mxu0 0
          %1445 = vmatmul.mubr.bf16.gmra.mrb[0].mxu0 %v1407
          %v1446 = vpop.f32.mrb[0].mxu0
          %v1447 = vadd.f32 0.0, %v1446
          %v1448 = vpop.f32.mrb[0].mxu0
          %v1449 = vpop.f32.mrb[0].mxu0
          %v1450 = vpop.f32.mrb[0].mxu0
          %1451 = vdwg.mxu0
          %v1453 = vsel %vm1405, %v944, 0
          %v1456 = vsel %vm1405, %v1252, 0
          %1458 = vmatprep.subr.bf16.mxu0 0
          %1459 = vmatpush1.bf16.xpose.msra.mxu0 %v1456
          %1460 = vmatprep.subr.bf16.mxu0 0
          %1461 = vmatpush1.bf16.xpose.msra.mxu0 0
          %1462 = vmatprep.subr.bf16.mxu0 0
          %1463 = vmatpush1.bf16.xpose.msra.mxu0 0
          %1464 = vmatprep.subr.bf16.mxu0 0
          %1465 = vmatpush1.bf16.xpose.msra.mxu0 0
          %1466 = vmatprep.subr.bf16.mxu0 0
          %1467 = vmatpush1.bf16.xpose.msra.mxu0 0
          %1468 = vmatprep.subr.bf16.mxu0 0
          %1469 = vmatpush1.bf16.xpose.msra.mxu0 0
          %1470 = vmatprep.subr.bf16.mxu0 0
          %1471 = vmatpush1.bf16.xpose.msra.mxu0 0
          %1472 = vmatprep.subr.bf16.mxu0 0
          %1473 = vmatpush1.bf16.xpose.msra.mxu0 0
          %1474 = vmatprep.subr.bf16.mxu0 0
          %1475 = vmatpush1.bf16.xpose.msra.mxu0 0
          %1476 = vmatprep.subr.bf16.mxu0 0
          %1477 = vmatpush1.bf16.xpose.msra.mxu0 0
          %1478 = vmatprep.subr.bf16.mxu0 0
          %1479 = vmatpush1.bf16.xpose.msra.mxu0 0
          %1480 = vmatprep.subr.bf16.mxu0 0
          %1481 = vmatpush1.bf16.xpose.msra.mxu0 0
          %1482 = vmatprep.subr.bf16.mxu0 0
          %1483 = vmatpush1.bf16.xpose.msra.mxu0 0
          %1484 = vmatprep.subr.bf16.mxu0 0
          %1485 = vmatpush1.bf16.xpose.msra.mxu0 0
          %1486 = vmatprep.subr.bf16.mxu0 0
          %1487 = vmatpush1.bf16.xpose.msra.mxu0 0
          %1488 = vmatprep.subr.bf16.mxu0 0
          %1489 = vmatpush1.bf16.xpose.msra.mxu0 0
          %1490 = vmatprep.mubr.bf16.mxu0 0
          %1491 = vmatmul.mubr.bf16.gmra.mrb[0].mxu0 %v1453
          %v1492 = vpop.f32.mrb[0].mxu0
          %v1493 = vadd.f32 0.0, %v1492
          %v1494 = vpop.f32.mrb[0].mxu0
          %v1495 = vpop.f32.mrb[0].mxu0
          %v1496 = vpop.f32.mrb[0].mxu0
          %1497 = vdwg.mxu0
          %v1499 = vsel %vm1405, %v945, 0
          %v1502 = vsel %vm1405, %v1253, 0
          %1504 = vmatprep.subr.bf16.mxu0 0
          %1505 = vmatpush1.bf16.xpose.msra.mxu0 %v1502
          %1506 = vmatprep.subr.bf16.mxu0 0
          %1507 = vmatpush1.bf16.xpose.msra.mxu0 0
          %1508 = vmatprep.subr.bf16.mxu0 0
          %1509 = vmatpush1.bf16.xpose.msra.mxu0 0
          %1510 = vmatprep.subr.bf16.mxu0 0
          %1511 = vmatpush1.bf16.xpose.msra.mxu0 0
          %1512 = vmatprep.subr.bf16.mxu0 0
          %1513 = vmatpush1.bf16.xpose.msra.mxu0 0
          %1514 = vmatprep.subr.bf16.mxu0 0
          %1515 = vmatpush1.bf16.xpose.msra.mxu0 0
          %1516 = vmatprep.subr.bf16.mxu0 0
          %1517 = vmatpush1.bf16.xpose.msra.mxu0 0
          %1518 = vmatprep.subr.bf16.mxu0 0
          %1519 = vmatpush1.bf16.xpose.msra.mxu0 0
          %1520 = vmatprep.subr.bf16.mxu0 0
          %1521 = vmatpush1.bf16.xpose.msra.mxu0 0
          %1522 = vmatprep.subr.bf16.mxu0 0
          %1523 = vmatpush1.bf16.xpose.msra.mxu0 0
          %1524 = vmatprep.subr.bf16.mxu0 0
          %1525 = vmatpush1.bf16.xpose.msra.mxu0 0
          %1526 = vmatprep.subr.bf16.mxu0 0
          %1527 = vmatpush1.bf16.xpose.msra.mxu0 0
          %1528 = vmatprep.subr.bf16.mxu0 0
          %1529 = vmatpush1.bf16.xpose.msra.mxu0 0
          %1530 = vmatprep.subr.bf16.mxu0 0
          %1531 = vmatpush1.bf16.xpose.msra.mxu0 0
          %1532 = vmatprep.subr.bf16.mxu0 0
          %1533 = vmatpush1.bf16.xpose.msra.mxu0 0
          %1534 = vmatprep.subr.bf16.mxu0 0
          %1535 = vmatpush1.bf16.xpose.msra.mxu0 0
          %1536 = vmatprep.mubr.bf16.mxu0 0
          %1537 = vmatmul.mubr.bf16.gmra.mrb[0].mxu0 %v1499
          %v1538 = vpop.f32.mrb[0].mxu0
          %v1539 = vadd.f32 0.0, %v1538
          %v1540 = vpop.f32.mrb[0].mxu0
          %v1541 = vpop.f32.mrb[0].mxu0
          %v1542 = vpop.f32.mrb[0].mxu0
          %1543 = vdwg.mxu0
          %v1545 = vsel %vm1405, %v946, 0
          %v1548 = vsel %vm1405, %v1254, 0
          %1550 = vmatprep.subr.bf16.mxu0 0
          %1551 = vmatpush1.bf16.xpose.msra.mxu0 %v1548
          %1552 = vmatprep.subr.bf16.mxu0 0
          %1553 = vmatpush1.bf16.xpose.msra.mxu0 0
          %1554 = vmatprep.subr.bf16.mxu0 0
          %1555 = vmatpush1.bf16.xpose.msra.mxu0 0
          %1556 = vmatprep.subr.bf16.mxu0 0
          %1557 = vmatpush1.bf16.xpose.msra.mxu0 0
          %1558 = vmatprep.subr.bf16.mxu0 0
          %1559 = vmatpush1.bf16.xpose.msra.mxu0 0
          %1560 = vmatprep.subr.bf16.mxu0 0
          %1561 = vmatpush1.bf16.xpose.msra.mxu0 0
          %1562 = vmatprep.subr.bf16.mxu0 0
          %1563 = vmatpush1.bf16.xpose.msra.mxu0 0
          %1564 = vmatprep.subr.bf16.mxu0 0
          %1565 = vmatpush1.bf16.xpose.msra.mxu0 0
          %1566 = vmatprep.subr.bf16.mxu0 0
          %1567 = vmatpush1.bf16.xpose.msra.mxu0 0
          %1568 = vmatprep.subr.bf16.mxu0 0
          %1569 = vmatpush1.bf16.xpose.msra.mxu0 0
          %1570 = vmatprep.subr.bf16.mxu0 0
          %1571 = vmatpush1.bf16.xpose.msra.mxu0 0
          %1572 = vmatprep.subr.bf16.mxu0 0
          %1573 = vmatpush1.bf16.xpose.msra.mxu0 0
          %1574 = vmatprep.subr.bf16.mxu0 0
          %1575 = vmatpush1.bf16.xpose.msra.mxu0 0
          %1576 = vmatprep.subr.bf16.mxu0 0
          %1577 = vmatpush1.bf16.xpose.msra.mxu0 0
          %1578 = vmatprep.subr.bf16.mxu0 0
          %1579 = vmatpush1.bf16.xpose.msra.mxu0 0
          %1580 = vmatprep.subr.bf16.mxu0 0
          %1581 = vmatpush1.bf16.xpose.msra.mxu0 0
          %1582 = vmatprep.mubr.bf16.mxu0 0
          %1583 = vmatmul.mubr.bf16.gmra.mrb[0].mxu0 %v1545
          %v1584 = vpop.f32.mrb[0].mxu0
          %v1585 = vadd.f32 0.0, %v1584
          %v1586 = vpop.f32.mrb[0].mxu0
          %v1587 = vpop.f32.mrb[0].mxu0
          %v1588 = vpop.f32.mrb[0].mxu0
          %1589 = vdwg.mxu0
          %v1590 = vlaneseq
          %v1591 = vand.u32 %v1590, 127
          %v1592 = vstv %s971
          %v1593 = vadd.s32 %v1592, %v1591
          %vm1594 = vcmp.le.s32.totalorder %v1593, %v951
          %v1595 = vsel %vm1594, 1, 0
          %vm1596 = vcmp.eq.s32.totalorder %v1595, 1
          %v1597 = vsel %vm1596, %v1447, -1e+30
          %v1598 = vsel %vm1596, %v1493, -1e+30
          %v1599 = vsel %vm1596, %v1539, -1e+30
          %v1600 = vsel %vm1596, %v1585, -1e+30
          %v1601 = vsel %vm1405, %v1597, -inf
          %1602 = vmax.xlane.f32.xlu0 %v1601
          %v1603 = vpop.xlane.xlu0 %1602
          %v1604 = vsel %vm1405, %v1598, -inf
          %1605 = vmax.xlane.f32.xlu0 %v1604
          %v1606 = vpop.xlane.xlu0 %1605
          %v1607 = vsel %vm1405, %v1599, -inf
          %1608 = vmax.xlane.f32.xlu0 %v1607
          %v1609 = vpop.xlane.xlu0 %1608
          %v1610 = vsel %vm1405, %v1600, -inf
          %1611 = vmax.xlane.f32.xlu0 %v1610
          %v1612 = vpop.xlane.xlu0 %1611
          %v1613 = vmax.f32 %v959, %v1603
          %v1614 = vmax.f32 %v960, %v1606
          %v1615 = vmax.f32 %v961, %v1609
          %v1616 = vmax.f32 %v962, %v1612
          %v1617 = vsub.f32 %v959, %v1613
          %v1618 = vsub.f32 %v960, %v1614
          %v1619 = vsub.f32 %v961, %v1615
          %v1620 = vsub.f32 %v962, %v1616
          %v1621 = vmul.f32 %v1617, 1.442695
          %v1622 = vpow.pop %v1621
          %v1623 = vmul.f32 %v1618, 1.442695
          %v1624 = vpow.pop %v1623
          %v1625 = vmul.f32 %v1619, 1.442695
          %v1626 = vpow.pop %v1625
          %v1627 = vmul.f32 %v1620, 1.442695
          %v1628 = vpow.pop %v1627
          %v1629 = vsub.f32 %v1597, %v1613
          %v1630 = vsub.f32 %v1598, %v1614
          %v1631 = vsub.f32 %v1599, %v1615
          %v1632 = vsub.f32 %v1600, %v1616
          %v1633 = vmul.f32 %v1629, 1.442695
          %v1634 = vpow.pop %v1633
          %v1635 = vmul.f32 %v1630, 1.442695
          %v1636 = vpow.pop %v1635
          %v1637 = vmul.f32 %v1631, 1.442695
          %v1638 = vpow.pop %v1637
          %v1639 = vmul.f32 %v1632, 1.442695
          %v1640 = vpow.pop %v1639
          %v1641 = vmul.f32 %v1622, %v963
          %v1642 = vmul.f32 %v1624, %v964
          %v1643 = vmul.f32 %v1626, %v965
          %v1644 = vmul.f32 %v1628, %v966
          %v1645 = vsel %vm1405, %v1634, 0.0
          %1646 = vadd.xlane.f32.xlu0 %v1645
          %v1647 = vpop.xlane.xlu0 %1646
          %v1648 = vsel %vm1405, %v1636, 0.0
          %1649 = vadd.xlane.f32.xlu0 %v1648
          %v1650 = vpop.xlane.xlu0 %1649
          %v1651 = vsel %vm1405, %v1638, 0.0
          %1652 = vadd.xlane.f32.xlu0 %v1651
          %v1653 = vpop.xlane.xlu0 %1652
          %v1654 = vsel %vm1405, %v1640, 0.0
          %1655 = vadd.xlane.f32.xlu0 %v1654
          %v1656 = vpop.xlane.xlu0 %1655
          %v1657 = vadd.f32 %v1641, %v1647
          %v1658 = vadd.f32 %v1642, %v1650
          %v1659 = vadd.f32 %v1643, %v1653
          %v1660 = vadd.f32 %v1644, %v1656
          %v1661 = vmul.f32 %v1622, %v967
          %v1662 = vmul.f32 %v1624, %v968
          %v1663 = vmul.f32 %v1626, %v969
          %v1664 = vmul.f32 %v1628, %v970
          %v1665 = vpack.c.bf16 %v1634, %v1634
          %v1666 = vpack.c.bf16 %v1636, %v1636
          %v1667 = vpack.c.bf16 %v1638, %v1638
          %v1668 = vpack.c.bf16 %v1640, %v1640
          %v1670 = vsel %vm1405, %v1665, 0
          %vm1672 = vcmask 1043456
          %v1674 = vsel %vm1672, %v1401, 0
          %1676 = vmatprep.subr.bf16.mxu0 0
          %1677 = vmatpush1.bf16.msra.mxu0 %v1674
          %1678 = vmatprep.subr.bf16.mxu0 0
          %1679 = vmatpush1.bf16.msra.mxu0 0
          %1680 = vmatprep.subr.bf16.mxu0 0
          %1681 = vmatpush1.bf16.msra.mxu0 0
          %1682 = vmatprep.subr.bf16.mxu0 0
          %1683 = vmatpush1.bf16.msra.mxu0 0
          %1684 = vmatprep.subr.bf16.mxu0 0
          %1685 = vmatpush1.bf16.msra.mxu0 0
          %1686 = vmatprep.subr.bf16.mxu0 0
          %1687 = vmatpush1.bf16.msra.mxu0 0
          %1688 = vmatprep.subr.bf16.mxu0 0
          %1689 = vmatpush1.bf16.msra.mxu0 0
          %1690 = vmatprep.subr.bf16.mxu0 0
          %1691 = vmatpush1.bf16.msra.mxu0 0
          %1692 = vmatprep.subr.bf16.mxu0 0
          %1693 = vmatpush1.bf16.msra.mxu0 0
          %1694 = vmatprep.subr.bf16.mxu0 0
          %1695 = vmatpush1.bf16.msra.mxu0 0
          %1696 = vmatprep.subr.bf16.mxu0 0
          %1697 = vmatpush1.bf16.msra.mxu0 0
          %1698 = vmatprep.subr.bf16.mxu0 0
          %1699 = vmatpush1.bf16.msra.mxu0 0
          %1700 = vmatprep.subr.bf16.mxu0 0
          %1701 = vmatpush1.bf16.msra.mxu0 0
          %1702 = vmatprep.subr.bf16.mxu0 0
          %1703 = vmatpush1.bf16.msra.mxu0 0
          %1704 = vmatprep.subr.bf16.mxu0 0
          %1705 = vmatpush1.bf16.msra.mxu0 0
          %1706 = vmatprep.subr.bf16.mxu0 0
          %1707 = vmatpush1.bf16.msra.mxu0 0
          %1708 = vmatprep.mubr.bf16.mxu0 0
          %1709 = vmatmul.mubr.bf16.gmra.mrb[0].mxu0 %v1670
          %v1710 = vpop.f32.mrb[0].mxu0
          %v1711 = vadd.f32 0.0, %v1710
          %v1712 = vpop.f32.mrb[0].mxu0
          %v1713 = vpop.f32.mrb[0].mxu0
          %v1714 = vpop.f32.mrb[0].mxu0
          %1715 = vdwg.mxu0
          %v1717 = vsel %vm1405, %v1666, 0
          %v1720 = vsel %vm1672, %v1402, 0
          %1722 = vmatprep.subr.bf16.mxu0 0
          %1723 = vmatpush1.bf16.msra.mxu0 %v1720
          %1724 = vmatprep.subr.bf16.mxu0 0
          %1725 = vmatpush1.bf16.msra.mxu0 0
          %1726 = vmatprep.subr.bf16.mxu0 0
          %1727 = vmatpush1.bf16.msra.mxu0 0
          %1728 = vmatprep.subr.bf16.mxu0 0
          %1729 = vmatpush1.bf16.msra.mxu0 0
          %1730 = vmatprep.subr.bf16.mxu0 0
          %1731 = vmatpush1.bf16.msra.mxu0 0
          %1732 = vmatprep.subr.bf16.mxu0 0
          %1733 = vmatpush1.bf16.msra.mxu0 0
          %1734 = vmatprep.subr.bf16.mxu0 0
          %1735 = vmatpush1.bf16.msra.mxu0 0
          %1736 = vmatprep.subr.bf16.mxu0 0
          %1737 = vmatpush1.bf16.msra.mxu0 0
          %1738 = vmatprep.subr.bf16.mxu0 0
          %1739 = vmatpush1.bf16.msra.mxu0 0
          %1740 = vmatprep.subr.bf16.mxu0 0
          %1741 = vmatpush1.bf16.msra.mxu0 0
          %1742 = vmatprep.subr.bf16.mxu0 0
          %1743 = vmatpush1.bf16.msra.mxu0 0
          %1744 = vmatprep.subr.bf16.mxu0 0
          %1745 = vmatpush1.bf16.msra.mxu0 0
          %1746 = vmatprep.subr.bf16.mxu0 0
          %1747 = vmatpush1.bf16.msra.mxu0 0
          %1748 = vmatprep.subr.bf16.mxu0 0
          %1749 = vmatpush1.bf16.msra.mxu0 0
          %1750 = vmatprep.subr.bf16.mxu0 0
          %1751 = vmatpush1.bf16.msra.mxu0 0
          %1752 = vmatprep.subr.bf16.mxu0 0
          %1753 = vmatpush1.bf16.msra.mxu0 0
          %1754 = vmatprep.mubr.bf16.mxu0 0
          %1755 = vmatmul.mubr.bf16.gmra.mrb[0].mxu0 %v1717
          %v1756 = vpop.f32.mrb[0].mxu0
          %v1757 = vadd.f32 0.0, %v1756
          %v1758 = vpop.f32.mrb[0].mxu0
          %v1759 = vpop.f32.mrb[0].mxu0
          %v1760 = vpop.f32.mrb[0].mxu0
          %1761 = vdwg.mxu0
          %v1763 = vsel %vm1405, %v1667, 0
          %v1766 = vsel %vm1672, %v1403, 0
          %1768 = vmatprep.subr.bf16.mxu0 0
          %1769 = vmatpush1.bf16.msra.mxu0 %v1766
          %1770 = vmatprep.subr.bf16.mxu0 0
          %1771 = vmatpush1.bf16.msra.mxu0 0
          %1772 = vmatprep.subr.bf16.mxu0 0
          %1773 = vmatpush1.bf16.msra.mxu0 0
          %1774 = vmatprep.subr.bf16.mxu0 0
          %1775 = vmatpush1.bf16.msra.mxu0 0
          %1776 = vmatprep.subr.bf16.mxu0 0
          %1777 = vmatpush1.bf16.msra.mxu0 0
          %1778 = vmatprep.subr.bf16.mxu0 0
          %1779 = vmatpush1.bf16.msra.mxu0 0
          %1780 = vmatprep.subr.bf16.mxu0 0
          %1781 = vmatpush1.bf16.msra.mxu0 0
          %1782 = vmatprep.subr.bf16.mxu0 0
          %1783 = vmatpush1.bf16.msra.mxu0 0
          %1784 = vmatprep.subr.bf16.mxu0 0
          %1785 = vmatpush1.bf16.msra.mxu0 0
          %1786 = vmatprep.subr.bf16.mxu0 0
          %1787 = vmatpush1.bf16.msra.mxu0 0
          %1788 = vmatprep.subr.bf16.mxu0 0
          %1789 = vmatpush1.bf16.msra.mxu0 0
          %1790 = vmatprep.subr.bf16.mxu0 0
          %1791 = vmatpush1.bf16.msra.mxu0 0
          %1792 = vmatprep.subr.bf16.mxu0 0
          %1793 = vmatpush1.bf16.msra.mxu0 0
          %1794 = vmatprep.subr.bf16.mxu0 0
          %1795 = vmatpush1.bf16.msra.mxu0 0
          %1796 = vmatprep.subr.bf16.mxu0 0
          %1797 = vmatpush1.bf16.msra.mxu0 0
          %1798 = vmatprep.subr.bf16.mxu0 0
          %1799 = vmatpush1.bf16.msra.mxu0 0
          %1800 = vmatprep.mubr.bf16.mxu0 0
          %1801 = vmatmul.mubr.bf16.gmra.mrb[0].mxu0 %v1763
          %v1802 = vpop.f32.mrb[0].mxu0
          %v1803 = vadd.f32 0.0, %v1802
          %v1804 = vpop.f32.mrb[0].mxu0
          %v1805 = vpop.f32.mrb[0].mxu0
          %v1806 = vpop.f32.mrb[0].mxu0
          %1807 = vdwg.mxu0
          %v1809 = vsel %vm1405, %v1668, 0
          %v1812 = vsel %vm1672, %v1404, 0
          %1814 = vmatprep.subr.bf16.mxu0 0
          %1815 = vmatpush1.bf16.msra.mxu0 %v1812
          %1816 = vmatprep.subr.bf16.mxu0 0
          %1817 = vmatpush1.bf16.msra.mxu0 0
          %1818 = vmatprep.subr.bf16.mxu0 0
          %1819 = vmatpush1.bf16.msra.mxu0 0
          %1820 = vmatprep.subr.bf16.mxu0 0
          %1821 = vmatpush1.bf16.msra.mxu0 0
          %1822 = vmatprep.subr.bf16.mxu0 0
          %1823 = vmatpush1.bf16.msra.mxu0 0
          %1824 = vmatprep.subr.bf16.mxu0 0
          %1825 = vmatpush1.bf16.msra.mxu0 0
          %1826 = vmatprep.subr.bf16.mxu0 0
          %1827 = vmatpush1.bf16.msra.mxu0 0
          %1828 = vmatprep.subr.bf16.mxu0 0
          %1829 = vmatpush1.bf16.msra.mxu0 0
          %1830 = vmatprep.subr.bf16.mxu0 0
          %1831 = vmatpush1.bf16.msra.mxu0 0
          %1832 = vmatprep.subr.bf16.mxu0 0
          %1833 = vmatpush1.bf16.msra.mxu0 0
          %1834 = vmatprep.subr.bf16.mxu0 0
          %1835 = vmatpush1.bf16.msra.mxu0 0
          %1836 = vmatprep.subr.bf16.mxu0 0
          %1837 = vmatpush1.bf16.msra.mxu0 0
          %1838 = vmatprep.subr.bf16.mxu0 0
          %1839 = vmatpush1.bf16.msra.mxu0 0
          %1840 = vmatprep.subr.bf16.mxu0 0
          %1841 = vmatpush1.bf16.msra.mxu0 0
          %1842 = vmatprep.subr.bf16.mxu0 0
          %1843 = vmatpush1.bf16.msra.mxu0 0
          %1844 = vmatprep.subr.bf16.mxu0 0
          %1845 = vmatpush1.bf16.msra.mxu0 0
          %1846 = vmatprep.mubr.bf16.mxu0 0
          %1847 = vmatmul.mubr.bf16.gmra.mrb[0].mxu0 %v1809
          %v1848 = vpop.f32.mrb[0].mxu0
          %v1849 = vadd.f32 0.0, %v1848
          %v1850 = vpop.f32.mrb[0].mxu0
          %v1851 = vpop.f32.mrb[0].mxu0
          %v1852 = vpop.f32.mrb[0].mxu0
          %1853 = vdwg.mxu0
          %v1854 = vadd.f32 %v1661, %v1711
          %v1855 = vadd.f32 %v1662, %v1757
          %v1856 = vadd.f32 %v1663, %v1803
          %v1857 = vadd.f32 %v1664, %v1849
        $region137: #{tpu_custom_call.1} parent=75 // loop_footer
          %s956 = sadd.s32 %s954, 1
        $region138: #{tpu_custom_call.1} parent=75 // loop_footer_branch
          %953 = sbr.rel target = $region134
        $region139: #{tpu_custom_call.1} parent=75 // loop_exit
          _
        %v1858 = vrcp.pop %v963
        %v1859 = vrcp.pop %v964
        %v1860 = vrcp.pop %v965
        %v1861 = vrcp.pop %v966
        %v1862 = vmul.f32 %v967, %v1858
        %v1863 = vmul.f32 %v968, %v1859
        %v1864 = vmul.f32 %v969, %v1860
        %v1865 = vmul.f32 %v970, %v1861
        %v1866 = vcombine.low %v1862, %v1864
        %v1867 = vcombine.high %v1862, %v1864
        %v1869 = vunpack.c.l.s4 1983009808
        %v1870 = vunpack.c.0.s8 %v1869
        %v1871 = vlaneseq
        %v1872 = vshrl.u32 %v1871, 7
        %v1873 = vsub.s32 %v1870, %v1872
        %v1874 = vrot.slane %v1866, %v1873
        %v1876 = vunpack.c.l.s4 1983009808
        %v1877 = vunpack.c.0.s8 %v1876
        %v1878 = vlaneseq
        %v1879 = vshrl.u32 %v1878, 7
        %v1880 = vsub.s32 %v1877, %v1879
        %v1881 = vrot.slane %v1867, %v1880
        %v1882 = vcombine.low %v1863, %v1865
        %v1883 = vcombine.high %v1863, %v1865
        %v1885 = vunpack.c.l.s4 1983009808
        %v1886 = vunpack.c.0.s8 %v1885
        %v1887 = vlaneseq
        %v1888 = vshrl.u32 %v1887, 7
        %v1889 = vsub.s32 %v1886, %v1888
        %v1890 = vrot.slane %v1882, %v1889
        %v1892 = vunpack.c.l.s4 1983009808
        %v1893 = vunpack.c.0.s8 %v1892
        %v1894 = vlaneseq
        %v1895 = vshrl.u32 %v1894, 7
        %v1896 = vsub.s32 %v1893, %v1895
        %v1897 = vrot.slane %v1883, %v1896
        %v1898 = vcombine.low %v1874, %v1890
        %v1899 = vcombine.high %v1874, %v1890
        %v1901 = vunpack.c.l.s4 1934713408
        %v1902 = vunpack.c.0.s8 %v1901
        %v1903 = vlaneseq
        %v1904 = vshrl.u32 %v1903, 7
        %v1905 = vsub.s32 %v1902, %v1904
        %v1906 = vrot.slane %v1898, %v1905
        %v1908 = vunpack.c.l.s4 1934713408
        %v1909 = vunpack.c.0.s8 %v1908
        %v1910 = vlaneseq
        %v1911 = vshrl.u32 %v1910, 7
        %v1912 = vsub.s32 %v1909, %v1911
        %v1913 = vrot.slane %v1899, %v1912
        %v1914 = vcombine.low %v1881, %v1897
        %v1915 = vcombine.high %v1881, %v1897
        %v1917 = vunpack.c.l.s4 1934713408
        %v1918 = vunpack.c.0.s8 %v1917
        %v1919 = vlaneseq
        %v1920 = vshrl.u32 %v1919, 7
        %v1921 = vsub.s32 %v1918, %v1920
        %v1922 = vrot.slane %v1914, %v1921
        %v1924 = vunpack.c.l.s4 1934713408
        %v1925 = vunpack.c.0.s8 %v1924
        %v1926 = vlaneseq
        %v1927 = vshrl.u32 %v1926, 7
        %v1928 = vsub.s32 %v1925, %v1927
        %v1929 = vrot.slane %v1915, %v1928
        %v1930 = vcombine.high %v1906, 0.0
        %v1931 = vcombine.high %v1913, 0.0
        %v1932 = vcombine.high %v1922, 0.0
        %v1933 = vcombine.high %v1929, 0.0
        %v1934 = vcombine.low %v1906, %v1913
        %v1936 = vunpack.c.l.s4 1983009808
        %v1937 = vunpack.c.0.s8 %v1936
        %v1938 = vlaneseq
        %v1939 = vshrl.u32 %v1938, 7
        %v1940 = vsub.s32 %v1937, %v1939
        %v1941 = vrot.slane %v1934, %v1940
        %v1942 = vcombine.low %v1930, %v1931
        %v1944 = vunpack.c.l.s4 1983009808
        %v1945 = vunpack.c.0.s8 %v1944
        %v1946 = vlaneseq
        %v1947 = vshrl.u32 %v1946, 7
        %v1948 = vsub.s32 %v1945, %v1947
        %v1949 = vrot.slane %v1942, %v1948
        %v1950 = vcombine.low %v1922, %v1929
        %v1952 = vunpack.c.l.s4 1983009808
        %v1953 = vunpack.c.0.s8 %v1952
        %v1954 = vlaneseq
        %v1955 = vshrl.u32 %v1954, 7
        %v1956 = vsub.s32 %v1953, %v1955
        %v1957 = vrot.slane %v1950, %v1956
        %v1958 = vcombine.low %v1932, %v1933
        %v1960 = vunpack.c.l.s4 1983009808
        %v1961 = vunpack.c.0.s8 %v1960
        %v1962 = vlaneseq
        %v1963 = vshrl.u32 %v1962, 7
        %v1964 = vsub.s32 %v1961, %v1963
        %v1965 = vrot.slane %v1958, %v1964
        %v1966 = vcombine.low %v1941, %v1949
        %v1967 = vcombine.high %v1941, %v1949
        %v1969 = vunpack.c.l.s4 1934713408
        %v1970 = vunpack.c.0.s8 %v1969
        %v1971 = vlaneseq
        %v1972 = vshrl.u32 %v1971, 7
        %v1973 = vsub.s32 %v1970, %v1972
        %v1974 = vrot.slane %v1966, %v1973
        %v1976 = vunpack.c.l.s4 1934713408
        %v1977 = vunpack.c.0.s8 %v1976
        %v1978 = vlaneseq
        %v1979 = vshrl.u32 %v1978, 7
        %v1980 = vsub.s32 %v1977, %v1979
        %v1981 = vrot.slane %v1967, %v1980
        %v1982 = vcombine.low %v1957, %v1965
        %v1983 = vcombine.high %v1957, %v1965
        %v1985 = vunpack.c.l.s4 1934713408
        %v1986 = vunpack.c.0.s8 %v1985
        %v1987 = vlaneseq
        %v1988 = vshrl.u32 %v1987, 7
        %v1989 = vsub.s32 %v1986, %v1988
        %v1990 = vrot.slane %v1982, %v1989
        %v1992 = vunpack.c.l.s4 1934713408
        %v1993 = vunpack.c.0.s8 %v1992
        %v1994 = vlaneseq
        %v1995 = vshrl.u32 %v1994, 7
        %v1996 = vsub.s32 %v1993, %v1995
        %v1997 = vrot.slane %v1983, %v1996
        %v1998 = vcombine.low %v1974, %v1990
        %v1999 = vcombine.high %v1974, %v1990
        %v2000 = vcombine.low %v1981, %v1997
        %v2001 = vcombine.high %v1981, %v1997
        %2003 = vrot.lane.b32.xlu0 %v1999, 8
        %v2004 = vpop.permute.xlu0 %2003
        %2007 = vrot.lane.b32.xlu0 %v2000, 16
        %v2008 = vpop.permute.xlu0 %2007
        %2011 = vrot.lane.b32.xlu0 %v2001, 24
        %v2012 = vpop.permute.xlu0 %2011
        %vm2014 = vcmask 64512
        %v2015 = vsel %vm2014, %v1998, %v2004
        %vm2016 = vcmask 130048
        %v2017 = vsel %vm2016, %v2015, %v2008
        %vm2018 = vcmask 195584
        %v2019 = vsel %vm2018, %v2017, %v2012
        %v2020 = vpack.c.bf16 %v2019, %v2019
        %v2021 = vld [vmem:[#allocation14] sm:$0xf]
        %v2022 = vld [vmem:[#allocation14 + $0x4] sm:$0xf]
        %v2023 = vld [vmem:[#allocation14 + $0x8] sm:$0xf]
        %v2024 = vld [vmem:[#allocation14 + $0xc] sm:$0xf]
        %v2029 = vunpack.c.l.b16 %v2021
        %v2030 = vunpack.c.l.b16 %v2022
        %v2031 = vunpack.c.l.b16 %v2023
        %v2032 = vunpack.c.l.b16 %v2024
        %v2033 = vpack.c.b16 %v2030, %v2029
        %v2034 = vpack.c.b16 %v2032, %v2031
        %v2038 = vsel %vm707, %v2020, 0
        %2040 = vmatprep.subr.bf16.mxu0 0
        %2041 = vmatpush1.bf16.msra.mxu0 %v2033
        %2042 = vmatprep.subr.bf16.mxu0 0
        %2043 = vmatpush1.bf16.msra.mxu0 %v2034
        %2044 = vmatprep.subr.bf16.mxu0 0
        %2045 = vmatpush1.bf16.msra.mxu0 0
        %2046 = vmatprep.subr.bf16.mxu0 0
        %2047 = vmatpush1.bf16.msra.mxu0 0
        %2048 = vmatprep.subr.bf16.mxu0 0
        %2049 = vmatpush1.bf16.msra.mxu0 0
        %2050 = vmatprep.subr.bf16.mxu0 0
        %2051 = vmatpush1.bf16.msra.mxu0 0
        %2052 = vmatprep.subr.bf16.mxu0 0
        %2053 = vmatpush1.bf16.msra.mxu0 0
        %2054 = vmatprep.subr.bf16.mxu0 0
        %2055 = vmatpush1.bf16.msra.mxu0 0
        %2056 = vmatprep.subr.bf16.mxu0 0
        %2057 = vmatpush1.bf16.msra.mxu0 0
        %2058 = vmatprep.subr.bf16.mxu0 0
        %2059 = vmatpush1.bf16.msra.mxu0 0
        %2060 = vmatprep.subr.bf16.mxu0 0
        %2061 = vmatpush1.bf16.msra.mxu0 0
        %2062 = vmatprep.subr.bf16.mxu0 0
        %2063 = vmatpush1.bf16.msra.mxu0 0
        %2064 = vmatprep.subr.bf16.mxu0 0
        %2065 = vmatpush1.bf16.msra.mxu0 0
        %2066 = vmatprep.subr.bf16.mxu0 0
        %2067 = vmatpush1.bf16.msra.mxu0 0
        %2068 = vmatprep.subr.bf16.mxu0 0
        %2069 = vmatpush1.bf16.msra.mxu0 0
        %2070 = vmatprep.subr.bf16.mxu0 0
        %2071 = vmatpush1.bf16.msra.mxu0 0
        %2072 = vmatprep.mubr.bf16.mxu0 0
        %2073 = vmatmul.mubr.bf16.gmra.mrb[0].mxu0 %v2038
        %v2074 = vpop.f32.mrb[0].mxu0
        %v2075 = vadd.f32 0.0, %v2074
        %v2076 = vpop.f32.mrb[0].mxu0
        %v2077 = vpop.f32.mrb[0].mxu0
        %v2078 = vpop.f32.mrb[0].mxu0
        %2079 = vdwg.mxu0
        %v2080 = vadd.f32 %v706, %v2075
        %v2081 = vld [vmem:[#allocation16] sm:$0x1]
        %v2082 = vld [vmem:[#allocation17] sm:$0x1]
        %v2083 = vsel %vm707, %v2080, 0.0
        %2084 = vadd.xlane.f32.xlu0 %v2083
        %v2085 = vpop.xlane.xlu0 %2084
        %v2086 = vmul.f32 %v2085, %v711
        %v2087 = vsub.f32 %v2080, %v2086
        %v2088 = vmul.f32 %v2087, %v2087
        %v2089 = vsel %vm707, %v2088, 0.0
        %2090 = vadd.xlane.f32.xlu0 %v2089
        %v2091 = vpop.xlane.xlu0 %2090
        %v2092 = vmul.f32 %v2091, %v711
        %v2093 = vadd.f32 %v2092, 1e-05
        %v2094 = vrsqrt.pop %v2093
        %v2095 = vmul.f32 %v2087, %v2094
        %v2097 = vlaneseq
        %v2098 = vshrl.u32 %v2097, 7
        %v2099 = vsub.s32 0, %v2098
        %v2100 = vrot.slane %v2081, %v2099
        %v2102 = vmul.f32 %v2095, %v2100
        %v2104 = vlaneseq
        %v2105 = vshrl.u32 %v2104, 7
        %v2106 = vsub.s32 0, %v2105
        %v2107 = vrot.slane %v2082, %v2106
        %v2109 = vadd.f32 %v2102, %v2107
        %v2110 = vpack.c.bf16 %v2109, %v2109
        %v2111 = vld [vmem:[#allocation19] sm:$0xf]
        %v2112 = vld [vmem:[#allocation19 + $0x4] sm:$0xf]
        %v2113 = vld [vmem:[#allocation19 + $0x8] sm:$0xf]
        %v2114 = vld [vmem:[#allocation19 + $0xc] sm:$0xf]
        %v2115 = vld [vmem:[#allocation20] sm:$0x1]
        %v2117 = vlaneseq
        %v2118 = vshrl.u32 %v2117, 7
        %v2119 = vsub.s32 0, %v2118
        %v2120 = vrot.slane %v2115, %v2119
        %v2126 = vunpack.c.l.b16 %v2111
        %v2127 = vunpack.c.l.b16 %v2112
        %v2128 = vunpack.c.l.b16 %v2113
        %v2129 = vunpack.c.l.b16 %v2114
        %v2130 = vpack.c.b16 %v2127, %v2126
        %v2131 = vpack.c.b16 %v2129, %v2128
        %v2135 = vsel %vm707, %v2110, 0
        %2137 = vmatprep.subr.bf16.mxu0 0
        %2138 = vmatpush1.bf16.msra.mxu0 %v2130
        %2139 = vmatprep.subr.bf16.mxu0 0
        %2140 = vmatpush1.bf16.msra.mxu0 %v2131
        %2141 = vmatprep.subr.bf16.mxu0 0
        %2142 = vmatpush1.bf16.msra.mxu0 0
        %2143 = vmatprep.subr.bf16.mxu0 0
        %2144 = vmatpush1.bf16.msra.mxu0 0
        %2145 = vmatprep.subr.bf16.mxu0 0
        %2146 = vmatpush1.bf16.msra.mxu0 0
        %2147 = vmatprep.subr.bf16.mxu0 0
        %2148 = vmatpush1.bf16.msra.mxu0 0
        %2149 = vmatprep.subr.bf16.mxu0 0
        %2150 = vmatpush1.bf16.msra.mxu0 0
        %2151 = vmatprep.subr.bf16.mxu0 0
        %2152 = vmatpush1.bf16.msra.mxu0 0
        %2153 = vmatprep.subr.bf16.mxu0 0
        %2154 = vmatpush1.bf16.msra.mxu0 0
        %2155 = vmatprep.subr.bf16.mxu0 0
        %2156 = vmatpush1.bf16.msra.mxu0 0
        %2157 = vmatprep.subr.bf16.mxu0 0
        %2158 = vmatpush1.bf16.msra.mxu0 0
        %2159 = vmatprep.subr.bf16.mxu0 0
        %2160 = vmatpush1.bf16.msra.mxu0 0
        %2161 = vmatprep.subr.bf16.mxu0 0
        %2162 = vmatpush1.bf16.msra.mxu0 0
        %2163 = vmatprep.subr.bf16.mxu0 0
        %2164 = vmatpush1.bf16.msra.mxu0 0
        %2165 = vmatprep.subr.bf16.mxu0 0
        %2166 = vmatpush1.bf16.msra.mxu0 0
        %2167 = vmatprep.subr.bf16.mxu0 0
        %2168 = vmatpush1.bf16.msra.mxu0 0
        %2169 = vmatprep.mubr.bf16.mxu0 0
        %2170 = vmatmul.mubr.bf16.gmra.mrb[0].mxu0 %v2135
        %v2171 = vpop.f32.mrb[0].mxu0
        %v2172 = vadd.f32 %v2120, %v2171
        %v2173 = vpop.f32.mrb[0].mxu0
        %v2174 = vpop.f32.mrb[0].mxu0
        %v2175 = vpop.f32.mrb[0].mxu0
        %2176 = vdwg.mxu0
        %v2177 = vmax.f32 %v2172, 0.0
        %v2178 = vpack.c.bf16 %v2177, %v2177
        %v2179 = vld [vmem:[#allocation22] sm:$0xf]
        %v2180 = vld [vmem:[#allocation22 + $0x4] sm:$0xf]
        %v2181 = vld [vmem:[#allocation22 + $0x8] sm:$0xf]
        %v2182 = vld [vmem:[#allocation22 + $0xc] sm:$0xf]
        %v2183 = vld [vmem:[#allocation22 + $0x10] sm:$0xf]
        %v2184 = vld [vmem:[#allocation22 + $0x14] sm:$0xf]
        %v2185 = vld [vmem:[#allocation22 + $0x18] sm:$0xf]
        %v2186 = vld [vmem:[#allocation22 + $0x1c] sm:$0xf]
        %v2187 = vld [vmem:[#allocation22 + $0x20] sm:$0xf]
        %v2188 = vld [vmem:[#allocation22 + $0x24] sm:$0xf]
        %v2189 = vld [vmem:[#allocation22 + $0x28] sm:$0xf]
        %v2190 = vld [vmem:[#allocation22 + $0x2c] sm:$0xf]
        %v2191 = vld [vmem:[#allocation22 + $0x30] sm:$0xf]
        %v2192 = vld [vmem:[#allocation22 + $0x34] sm:$0xf]
        %v2193 = vld [vmem:[#allocation22 + $0x38] sm:$0xf]
        %v2194 = vld [vmem:[#allocation22 + $0x3c] sm:$0xf]
        %v2195 = vld [vmem:[#allocation23] sm:$0x1]
        %v2197 = vlaneseq
        %v2198 = vshrl.u32 %v2197, 7
        %v2199 = vsub.s32 0, %v2198
        %v2200 = vrot.slane %v2195, %v2199
        %v2218 = vunpack.c.l.b16 %v2179
        %v2219 = vunpack.c.l.b16 %v2180
        %v2220 = vunpack.c.l.b16 %v2181
        %v2221 = vunpack.c.l.b16 %v2182
        %v2222 = vunpack.c.l.b16 %v2183
        %v2223 = vunpack.c.l.b16 %v2184
        %v2224 = vunpack.c.l.b16 %v2185
        %v2225 = vunpack.c.l.b16 %v2186
        %v2226 = vunpack.c.l.b16 %v2187
        %v2227 = vunpack.c.l.b16 %v2188
        %v2228 = vunpack.c.l.b16 %v2189
        %v2229 = vunpack.c.l.b16 %v2190
        %v2230 = vunpack.c.l.b16 %v2191
        %v2231 = vunpack.c.l.b16 %v2192
        %v2232 = vunpack.c.l.b16 %v2193
        %v2233 = vunpack.c.l.b16 %v2194
        %v2234 = vpack.c.b16 %v2219, %v2218
        %v2235 = vpack.c.b16 %v2221, %v2220
        %v2236 = vpack.c.b16 %v2223, %v2222
        %v2237 = vpack.c.b16 %v2225, %v2224
        %v2238 = vpack.c.b16 %v2227, %v2226
        %v2239 = vpack.c.b16 %v2229, %v2228
        %v2240 = vpack.c.b16 %v2231, %v2230
        %v2241 = vpack.c.b16 %v2233, %v2232
        %2250 = vmatprep.subr.bf16.mxu0 0
        %2251 = vmatpush1.bf16.msra.mxu0 %v2234
        %2252 = vmatprep.subr.bf16.mxu0 0
        %2253 = vmatpush1.bf16.msra.mxu0 %v2235
        %2254 = vmatprep.subr.bf16.mxu0 0
        %2255 = vmatpush1.bf16.msra.mxu0 %v2236
        %2256 = vmatprep.subr.bf16.mxu0 0
        %2257 = vmatpush1.bf16.msra.mxu0 %v2237
        %2258 = vmatprep.subr.bf16.mxu0 0
        %2259 = vmatpush1.bf16.msra.mxu0 %v2238
        %2260 = vmatprep.subr.bf16.mxu0 0
        %2261 = vmatpush1.bf16.msra.mxu0 %v2239
        %2262 = vmatprep.subr.bf16.mxu0 0
        %2263 = vmatpush1.bf16.msra.mxu0 %v2240
        %2264 = vmatprep.subr.bf16.mxu0 0
        %2265 = vmatpush1.bf16.msra.mxu0 %v2241
        %2266 = vmatprep.subr.bf16.mxu0 0
        %2267 = vmatpush1.bf16.msra.mxu0 0
        %2268 = vmatprep.subr.bf16.mxu0 0
        %2269 = vmatpush1.bf16.msra.mxu0 0
        %2270 = vmatprep.subr.bf16.mxu0 0
        %2271 = vmatpush1.bf16.msra.mxu0 0
        %2272 = vmatprep.subr.bf16.mxu0 0
        %2273 = vmatpush1.bf16.msra.mxu0 0
        %2274 = vmatprep.subr.bf16.mxu0 0
        %2275 = vmatpush1.bf16.msra.mxu0 0
        %2276 = vmatprep.subr.bf16.mxu0 0
        %2277 = vmatpush1.bf16.msra.mxu0 0
        %2278 = vmatprep.subr.bf16.mxu0 0
        %2279 = vmatpush1.bf16.msra.mxu0 0
        %2280 = vmatprep.subr.bf16.mxu0 0
        %2281 = vmatpush1.bf16.msra.mxu0 0
        %2282 = vmatprep.mubr.bf16.mxu0 0
        %2283 = vmatmul.mubr.bf16.gmra.mrb[0].mxu0 %v2178
        %v2284 = vpop.f32.mrb[0].mxu0
        %v2285 = vadd.f32 %v2200, %v2284
        %v2286 = vpop.f32.mrb[0].mxu0
        %v2287 = vpop.f32.mrb[0].mxu0
        %v2288 = vpop.f32.mrb[0].mxu0
        %2289 = vdwg.mxu0
        %v2290 = vadd.f32 %v2080, %v2285
        %2291 = vst.msk [vmem:[%s702] sm:$0xff] %vm707, %v2290
        %s2292 = sand.u32 %s368, 1
        %s2293 = scalar_lea.sflag [#allocation4], %s2292
        %s2294 = sand.u32 %s368, 1
        %s2295 = smul.addr %s2294, 8
        %s2296 = scalar_lea.vmem [#allocation25], %s2295
        // Predicated region
        $region140: #{tpu_custom_call.1} parent=75 // pred_check
          %p2297 = pneg %p378
        $region141: #{tpu_custom_call.1} parent=75 // pred_check_branch
          %2299 = sbr.rel (%p2297) target = $region143
        $region142: #{tpu_custom_call.1} parent=75 // pred_region
          %s2301 = ssub.s32 128, 128
          %2302 = vsyncadd %s2293, %s2301
          %s2303 = smul.addr %s44, 2
          %s2304 = sadd.s32 %s45, %s2303
          %s2305 = smul.addr %s2304, 128
          %s2306 = scalar_lea.hbm %s14, %s2305
          %s2308 = sshll.u32 %s2296, 4
          %s2309 = int_to_ptr.vmem [resolvable:$true] %s2308
          %2311 = dma.vmem_to_hbm [thread:$0]  %s2309, 128, %s2306, %s2293
        $region143: #{tpu_custom_call.1} parent=75 // pred_fallthru
          _
      $region76: #{tpu_custom_call.1} parent=5 // pred_fallthru
        _
      %p2312 = scmp.le.s32.totalorder 2, %s35
      // Predicated region
      $region144: #{tpu_custom_call.1} parent=5 // pred_check
        %p2313 = pneg %p2312
      $region145: #{tpu_custom_call.1} parent=5 // pred_check_branch
        %2315 = sbr.rel (%p2313) target = $region147
      $region146: #{tpu_custom_call.1} parent=5 // pred_region
        %s2316 = ssub.s32 %s35, 2
        // Predicated region
        $region148: #{tpu_custom_call.1} parent=146 // pred_check
          %p2317 = pneg %p384
        $region149: #{tpu_custom_call.1} parent=146 // pred_check_branch
          %2319 = sbr.rel (%p2317) target = $region151
        $region150: #{tpu_custom_call.1} parent=146 // pred_region
          %s2320 = sand.u32 %s369, 1
          %s2321 = scalar_lea.sflag [#allocation4], %s2320
          %s2322 = sand.u32 %s369, 1
          %s2323 = smul.addr %s2322, 8
          %s2324 = scalar_lea.vmem [#allocation25], %s2323
          %2325 = dma.done %s2321, 128
        $region151: #{tpu_custom_call.1} parent=146 // pred_fallthru
          _
      $region147: #{tpu_custom_call.1} parent=5 // pred_fallthru
        _
    $region6: #{tpu_custom_call.1} parent=1 // loop_footer
      %s39 = sadd.s32 1, %s35
    $region7: #{tpu_custom_call.1} parent=1 // loop_footer_branch
      %34 = sbr.rel target = $region3
    $region8: #{tpu_custom_call.1} parent=1 // loop_exit
      _
    %2326 = vsyncpa [#allocation3], 1
    %s2327 = scalar_lea.sflag [#allocation3], 1
    %2328 = vsyncpa %s2327, 1
    %2329 = vsyncpa [#allocation6], 1
    %s2330 = scalar_lea.sflag [#allocation6], 1
    %2331 = vsyncpa %s2330, 1
    %2332 = vsyncpa [#allocation9], 1
    %2333 = vsyncpa [#allocation12], 1
    %2334 = vsyncpa [#allocation15], 1
    %2335 = vsyncpa [#allocation18], 1
    %2336 = vsyncpa [#allocation21], 1
    %2337 = vsyncpa [#allocation24], 1
    %2338 = vsyncpa [#allocation4], 1
    %s2339 = scalar_lea.sflag [#allocation4], 1
    %2340 = vsyncpa %s2339, 1

</llo_original>
